<compile_context>
chip_gen: v7x
topology: tpu7x:2x2x1
jax: 0.10.0
libtpu: 0.0.40
codegen_flags: <defaults>
</compile_context>

<pallas_src>
import jax
import jax.numpy as jnp
from jax.experimental import pallas as pl
from jax.experimental.pallas import tpu as pltpu

# ---------------- model hyper-params (small, consistent with the forward) ----
B = 2          # batch
T = 8          # seq_len
IMG_DIM = 256  # stands in for 2048
H = 128        # stands in for 768 (BERT hidden / GRU hidden)
VOCAB = 1024   # stands in for 30522
MAX_POS = 64
TYPE_VOCAB = 2
LN_EPS = 1e-12
TILE_N = 512   # fc vocab tile (lane-dense, multiple of 128)


# ------------------- kernel 1: img_proj + LayerNorm + GRU --------------------
def gru_kernel(img_ref, emb_ref, wimg_ref, bimg_ref, lng_ref, lnb_ref,
               wih_ref, bih_ref, whh_ref, bhn_ref, o_ref):
    """Single invocation (no grid).  Produces the GRU outputs as a dense
    bf16 [B*T, H] slab consumed by the vocab-tiled fc kernel."""
    bf16 = jnp.bfloat16
    f32 = jnp.float32
    Bn = img_ref.shape[0]
    Tn = emb_ref.shape[1] + 1
    Hd = wimg_ref.shape[1]

    # --- image projection: [B, IMG_DIM] @ [IMG_DIM, H] + b --------------------
    img_proj = (jnp.dot(img_ref[...].astype(bf16), wimg_ref[...],
                        preferred_element_type=f32)
                + bimg_ref[...])                              # [B, H] f32

    # --- BERT-embeddings LayerNorm on the T-1 used tokens ---------------------
    emb = emb_ref[...]                                        # [B, T-1, H] f32
    mu = jnp.mean(emb, axis=-1, keepdims=True)
    var = jnp.mean((emb - mu) ** 2, axis=-1, keepdims=True)
    ln_emb = ((emb - mu) * jax.lax.rsqrt(var + LN_EPS)
              * lng_ref[...] + lnb_ref[...])                  # [B, T-1, H] f32

    # --- decoder_input built as a VALUE (no scratch round-trip) ---------------
    dec = jnp.concatenate([img_proj[:, None, :], ln_emb], axis=1)   # [B, T, H]

    # --- hoisted input-side GRU matmul (r/z hidden biases folded into b_ih) ---
    dec_flat = dec.reshape(Bn * Tn, Hd).astype(bf16)
    gi = (jnp.dot(dec_flat, wih_ref[...], preferred_element_type=f32)
          + bih_ref[...])                                     # [B*T, 3H] f32
    gi3 = gi.reshape(Bn, Tn, 3 * Hd)

    # --- serial recurrence: only h @ W_hh per step -----------------------------
    w_hh = whh_ref[...]                                       # [H, 3H] bf16
    b_hn = jnp.broadcast_to(bhn_ref[...], (Bn, Hd))           # hoisted, [B, H]
    h = jnp.zeros((Bn, Hd), f32)
    hs = []
    for t in range(Tn):                                       # static unroll
        gh = jnp.dot(h.astype(bf16), w_hh, preferred_element_type=f32)  # [B,3H]
        gi_t = gi3[:, t, :]                                   # [B, 3H]
        r = jax.nn.sigmoid(gi_t[:, :Hd] + gh[:, :Hd])
        z = jax.nn.sigmoid(gi_t[:, Hd:2 * Hd] + gh[:, Hd:2 * Hd])
        n = jnp.tanh(gi_t[:, 2 * Hd:] + r * (gh[:, 2 * Hd:] + b_hn))
        h = (1.0 - z) * n + z * h
        hs.append(h)

    # one dense, lane-aligned store; pre-cast to bf16 for the fc kernel
    o_ref[...] = jnp.stack(hs, axis=1).astype(jnp.bfloat16).reshape(Bn * Tn, Hd)


# ----------------------- kernel 2: vocab-tiled fc -----------------------------
def fc_kernel(gru_ref, wfc_ref, bfc_ref, o_ref):
    o_ref[...] = (jnp.dot(gru_ref[...], wfc_ref[...],
                          preferred_element_type=jnp.float32)
                  + bfc_ref[...])


# ------------------------------ forward wrapper ------------------------------
def video_text_forward(params, img_feat, input_ids, attention_mask):
    del attention_mask  # unused in the reference forward (signature parity)
    Bn, Tn = input_ids.shape

    # Embedding gather stays in glue (no clean Pallas gather for table lookups).
    # The last token's embedding is never consumed by the decoder -> skip it.
    ids = input_ids[:, :-1]                                    # [B, T-1]
    emb_sum = (
        params["word_emb"][ids]
        + params["pos_emb"][: Tn - 1][None, :, :]
        + params["type_emb"][0][None, None, :]
    )                                                          # [B, T-1, H] f32

    # --- call 1: img_proj + LN + GRU (single invocation, everything in VMEM) --
    gru_flat = pl.pallas_call(
        gru_kernel,
        out_shape=jax.ShapeDtypeStruct((Bn * Tn, H), jnp.bfloat16),
    )(
        img_feat, emb_sum,
        params["w_img"], params["b_img"],
        params["ln_g"], params["ln_b"],
        params["w_ih_t"], params["b_ih_fold"],
        params["w_hh_t"], params["b_hn"],
    )

    # --- call 2: fc over vocab tiles (parallel axis, weight-streaming bound) --
    n_tiles = VOCAB // TILE_N
    fc_cost = pl.CostEstimate(
        flops=2 * Bn * Tn * H * VOCAB,
        transcendentals=0,
        bytes_accessed=(H * VOCAB * 2            # w_fc (bf16)
                        + Bn * Tn * H * 2        # gru_out (bf16)
                        + VOCAB * 4              # b_fc
                        + Bn * Tn * VOCAB * 4),  # logits
    )
    logits_flat = pl.pallas_call(
        fc_kernel,
        out_shape=jax.ShapeDtypeStruct((Bn * Tn, VOCAB), jnp.float32),
        grid=(n_tiles,),
        in_specs=[
            # constant-index input; at real sizes mark pipeline_mode=pl.Buffered(1)
            pl.BlockSpec((Bn * Tn, H), lambda i: (0, 0)),      # gru_out (bf16)
            pl.BlockSpec((H, TILE_N), lambda i: (0, i)),       # w_fc tile (bf16)
            pl.BlockSpec((1, TILE_N), lambda i: (0, i)),       # b_fc tile
        ],
        out_specs=pl.BlockSpec((Bn * Tn, TILE_N), lambda i: (0, i)),
        compiler_params=pltpu.CompilerParams(
            dimension_semantics=("parallel",)),                # shards across TCs
        cost_estimate=fc_cost,
    )(gru_flat, params["w_fc"], params["b_fc"])

    return logits_flat.reshape(Bn, Tn, VOCAB)


# ----------------------- pure-JAX reference (for checking) -------------------
def reference_forward(params, img_feat, input_ids, attention_mask):
    del attention_mask
    Bn, Tn = input_ids.shape
    bf16, f32 = jnp.bfloat16, jnp.float32

    img_proj = (jnp.dot(img_feat.astype(bf16), params["w_img"],
                        preferred_element_type=f32) + params["b_img"])
    ids = input_ids[:, :-1]
    emb = (params["word_emb"][ids]
           + params["pos_emb"][: Tn - 1][None, :, :]
           + params["type_emb"][0][None, None, :])
    mu = emb.mean(-1, keepdims=True)
    var = ((emb - mu) ** 2).mean(-1, keepdims=True)
    ln_emb = ((emb - mu) * jax.lax.rsqrt(var + LN_EPS)
              * params["ln_g"] + params["ln_b"])
    dec_in = jnp.concatenate([img_proj[:, None, :], ln_emb], axis=1)  # [B,T,H]

    def step(h, x_t):
        gi = (jnp.dot(x_t.astype(bf16), params["w_ih_t"],
                      preferred_element_type=f32) + params["b_ih"])
        gh = (jnp.dot(h.astype(bf16), params["w_hh_t"],
                      preferred_element_type=f32) + params["b_hh"])
        i_r, i_z, i_n = jnp.split(gi, 3, axis=-1)
        h_r, h_z, h_n = jnp.split(gh, 3, axis=-1)
        r = jax.nn.sigmoid(i_r + h_r)
        z = jax.nn.sigmoid(i_z + h_z)
        n = jnp.tanh(i_n + r * h_n)
        h_new = (1.0 - z) * n + z * h
        return h_new, h_new

    h0 = jnp.zeros((Bn, H), f32)
    _, outs = jax.lax.scan(step, h0, jnp.transpose(dec_in, (1, 0, 2)))
    gru_out = jnp.transpose(outs, (1, 0, 2))                          # [B,T,H]
    logits = (jnp.dot(gru_out.reshape(Bn * Tn, H).astype(bf16), params["w_fc"],
                      preferred_element_type=f32) + params["b_fc"])
    return logits.reshape(Bn, Tn, VOCAB)


# ------------------------------- params / main -------------------------------
def init_params(key):
    ks = jax.random.split(key, 10)
    n = lambda k, shape, s=0.02: s * jax.random.normal(k, shape, jnp.float32)
    bf16 = jnp.bfloat16

    b_ih = n(ks[7], (1, 3 * H))
    b_hh = n(ks[8], (1, 3 * H))
    # Fold the r/z hidden biases into the input bias (the n-gate hidden bias
    # must stay separate: n = tanh(W_in x + b_in + r*(W_hn h + b_hn))).
    b_ih_fold = b_ih + jnp.concatenate(
        [b_hh[:, :2 * H], jnp.zeros((1, H), jnp.float32)], axis=1)
    b_hn = b_hh[:, 2 * H:]

    return {
        # nn.Linear(2048, 768) -> stored as [in, out], bf16 for the MXU
        "w_img": n(ks[0], (IMG_DIM, H)).astype(bf16),
        "b_img": n(ks[1], (1, H)),
        # BertModel.embeddings (gather tables stay f32 in glue)
        "word_emb": n(ks[2], (VOCAB, H)),
        "pos_emb": n(ks[3], (MAX_POS, H)),
        "type_emb": n(ks[4], (TYPE_VOCAB, H)),
        "ln_g": jnp.ones((1, H), jnp.float32),
        "ln_b": jnp.zeros((1, H), jnp.float32),
        # nn.GRU(768, 768) -> pre-transposed once to [H, 3H] (gate order r,z,n)
        "w_ih_t": n(ks[5], (H, 3 * H)).astype(bf16),
        "w_hh_t": n(ks[6], (H, 3 * H)).astype(bf16),
        "b_ih": b_ih, "b_hh": b_hh,            # unfolded (reference path)
        "b_ih_fold": b_ih_fold, "b_hn": b_hn,  # folded (kernel path)
        # nn.Linear(768, vocab) -> [in, out], bf16
        "w_fc": n(ks[9], (H, VOCAB)).astype(bf16),
        "b_fc": jnp.zeros((1, VOCAB), jnp.float32),
    }


if __name__ == "__main__":
    key = jax.random.PRNGKey(0)
    k_par, k_img, k_ids = jax.random.split(key, 3)

    params = init_params(k_par)
    img_feat = jax.random.normal(k_img, (B, IMG_DIM), jnp.float32)
    input_ids = jax.random.randint(k_ids, (B, T), 0, VOCAB, dtype=jnp.int32)
    attention_mask = jnp.ones((B, T), jnp.int32)

    fwd = jax.jit(video_text_forward)
    ref_fwd = jax.jit(reference_forward)

    logits = jax.block_until_ready(fwd(params, img_feat, input_ids, attention_mask))
    ref = jax.block_until_ready(ref_fwd(params, img_feat, input_ids, attention_mask))

    assert logits.shape == (B, T, VOCAB), logits.shape
    max_err = float(jnp.max(jnp.abs(logits - ref)))
    assert jnp.allclose(logits, ref, rtol=2e-2, atol=2e-3), max_err
    print("KERNEL_OK")
</pallas_src>

<mosaic_0001>
module attributes {stable_mosaic.version = 11 : i64} {
  func.func @fc_kernel(%arg0: i32, %arg1: memref<16x128xbf16, #tpu.memory_space<vmem>>, %arg2: memref<128x512xbf16, #tpu.memory_space<vmem>>, %arg3: memref<1x512xf32, #tpu.memory_space<vmem>>, %arg4: memref<16x512xf32, #tpu.memory_space<vmem>>) attributes {dimension_semantics = [#tpu.dimension_semantics<parallel>], iteration_bounds = array<i64: 2>, scalar_prefetch = 0 : i64, scratch_operands = 0 : i64, tpu.core_type = #tpu.core_type<tc>, window_params = [{pipeline_mode = #tpu.pipeline_mode<synchronous>, transform_indices = @transform_0, window_bounds = array<i64: 16, 128>}, {transform_indices = @transform_1, window_bounds = array<i64: 128, 512>}, {transform_indices = @transform_2, window_bounds = array<i64: 1, 512>}, {transform_indices = @transform_3, window_bounds = array<i64: 16, 512>}]} {
    %c0 = arith.constant 0 : index
    %c0_0 = arith.constant 0 : index
    %0 = vector.load %arg1[%c0, %c0_0] : memref<16x128xbf16, #tpu.memory_space<vmem>>, vector<16x128xbf16>
    %c0_1 = arith.constant 0 : index
    %c0_2 = arith.constant 0 : index
    %1 = vector.load %arg2[%c0_1, %c0_2] : memref<128x512xbf16, #tpu.memory_space<vmem>>, vector<128x512xbf16>
    %cst = arith.constant dense<0.000000e+00> : vector<16x512xf32>
    %2 = tpu.matmul %0, %1, %cst {dimension_numbers = #tpu.dot_dimension_numbers<[1], [0], [0], [1], [0, 0, 1, 1], [], []>} : vector<16x128xbf16>, vector<128x512xbf16>, vector<16x512xf32> -> vector<16x512xf32>
    %c0_3 = arith.constant 0 : index
    %c0_4 = arith.constant 0 : index
    %3 = vector.load %arg3[%c0_3, %c0_4] : memref<1x512xf32, #tpu.memory_space<vmem>>, vector<1x512xf32>
    %4 = vector.broadcast %3 : vector<1x512xf32> to vector<16x512xf32>
    %5 = arith.addf %2, %4 : vector<16x512xf32>
    %c0_5 = arith.constant 0 : index
    %c0_6 = arith.constant 0 : index
    %6 = vector.load %arg4[%c0_5, %c0_6] : memref<16x512xf32, #tpu.memory_space<vmem>>, vector<16x512xf32>
    tpu.vector_store %arg4[%c0_5, %c0_6], %5 {strides = array<i32>} : memref<16x512xf32, #tpu.memory_space<vmem>>, vector<16x512xf32>,
    return
  }
  func.func @transform_0(%arg0: i32) -> (i32, i32) {
    %c0_i32 = arith.constant 0 : i32
    %c0_i32_0 = arith.constant 0 : i32
    %c0_i32_1 = arith.constant 0 : i32
    return %c0_i32, %c0_i32_0 : i32, i32
  }
  func.func @transform_1(%arg0: i32) -> (i32, i32) {
    %c0_i32 = arith.constant 0 : i32
    %c0_i32_0 = arith.constant 0 : i32
    return %c0_i32, %arg0 : i32, i32
  }
  func.func @transform_2(%arg0: i32) -> (i32, i32) {
    %c0_i32 = arith.constant 0 : i32
    %c0_i32_0 = arith.constant 0 : i32
    return %c0_i32, %arg0 : i32, i32
  }
  func.func @transform_3(%arg0: i32) -> (i32, i32) {
    %c0_i32 = arith.constant 0 : i32
    %c0_i32_0 = arith.constant 0 : i32
    return %c0_i32, %arg0 : i32, i32
  }
}

module attributes {stable_mosaic.version = 11 : i64} {
  func.func @gru_kernel(%arg0: memref<2x256xf32, #tpu.memory_space<vmem>>, %arg1: memref<2x7x128xf32, #tpu.memory_space<vmem>>, %arg2: memref<256x128xbf16, #tpu.memory_space<vmem>>, %arg3: memref<1x128xf32, #tpu.memory_space<vmem>>, %arg4: memref<1x128xf32, #tpu.memory_space<vmem>>, %arg5: memref<1x128xf32, #tpu.memory_space<vmem>>, %arg6: memref<128x384xbf16, #tpu.memory_space<vmem>>, %arg7: memref<1x384xf32, #tpu.memory_space<vmem>>, %arg8: memref<128x384xbf16, #tpu.memory_space<vmem>>, %arg9: memref<1x128xf32, #tpu.memory_space<vmem>>, %arg10: memref<16x128xbf16, #tpu.memory_space<vmem>>) attributes {dimension_semantics = [], scalar_prefetch = 0 : i64, scratch_operands = 0 : i64, tpu.core_type = #tpu.core_type<tc>} {
    %c0 = arith.constant 0 : index
    %c0_0 = arith.constant 0 : index
    %0 = vector.load %arg0[%c0, %c0_0] : memref<2x256xf32, #tpu.memory_space<vmem>>, vector<2x256xf32>
    %1 = arith.truncf %0 : vector<2x256xf32> to vector<2x256xbf16>
    %c0_1 = arith.constant 0 : index
    %c0_2 = arith.constant 0 : index
    %2 = vector.load %arg2[%c0_1, %c0_2] : memref<256x128xbf16, #tpu.memory_space<vmem>>, vector<256x128xbf16>
    %cst = arith.constant dense<0.000000e+00> : vector<2x128xf32>
    %3 = tpu.matmul %1, %2, %cst {dimension_numbers = #tpu.dot_dimension_numbers<[1], [0], [0], [1], [0, 0, 1, 1], [], []>} : vector<2x256xbf16>, vector<256x128xbf16>, vector<2x128xf32> -> vector<2x128xf32>
    %c0_3 = arith.constant 0 : index
    %c0_4 = arith.constant 0 : index
    %4 = vector.load %arg3[%c0_3, %c0_4] : memref<1x128xf32, #tpu.memory_space<vmem>>, vector<1x128xf32>
    %5 = vector.broadcast %4 : vector<1x128xf32> to vector<2x128xf32>
    %6 = arith.addf %3, %5 : vector<2x128xf32>
    %c0_5 = arith.constant 0 : index
    %c0_6 = arith.constant 0 : index
    %c0_7 = arith.constant 0 : index
    %7 = vector.load %arg1[%c0_5, %c0_6, %c0_7] : memref<2x7x128xf32, #tpu.memory_space<vmem>>, vector<2x7x128xf32>
    %cst_8 = arith.constant dense<0.000000e+00> : vector<2x7xf32>
    %8 = vector.multi_reduction <add>, %7, %cst_8 [2] : vector<2x7x128xf32> to vector<2x7xf32>
    %9 = vector.shape_cast %8 : vector<2x7xf32> to vector<2x7x1xf32>
    %cst_9 = arith.constant 1.280000e+02 : f32
    %10 = vector.broadcast %cst_9 : f32 to vector<2x7x1xf32>
    %11 = arith.divf %9, %10 : vector<2x7x1xf32>
    %12 = vector.broadcast %11 : vector<2x7x1xf32> to vector<2x7x128xf32>
    %13 = arith.subf %7, %12 : vector<2x7x128xf32>
    %14 = arith.mulf %13, %13 : vector<2x7x128xf32>
    %cst_10 = arith.constant dense<0.000000e+00> : vector<2x7xf32>
    %15 = vector.multi_reduction <add>, %14, %cst_10 [2] : vector<2x7x128xf32> to vector<2x7xf32>
    %16 = vector.shape_cast %15 : vector<2x7xf32> to vector<2x7x1xf32>
    %cst_11 = arith.constant 1.280000e+02 : f32
    %17 = vector.broadcast %cst_11 : f32 to vector<2x7x1xf32>
    %18 = arith.divf %16, %17 : vector<2x7x1xf32>
    %19 = vector.broadcast %11 : vector<2x7x1xf32> to vector<2x7x128xf32>
    %20 = arith.subf %7, %19 : vector<2x7x128xf32>
    %cst_12 = arith.constant 9.99999996E-13 : f32
    %21 = vector.broadcast %cst_12 : f32 to vector<2x7x1xf32>
    %22 = arith.addf %18, %21 : vector<2x7x1xf32>
    %23 = math.rsqrt %22 : vector<2x7x1xf32>
    %24 = vector.broadcast %23 : vector<2x7x1xf32> to vector<2x7x128xf32>
    %25 = arith.mulf %20, %24 : vector<2x7x128xf32>
    %c0_13 = arith.constant 0 : index
    %c0_14 = arith.constant 0 : index
    %26 = vector.load %arg4[%c0_13, %c0_14] : memref<1x128xf32, #tpu.memory_space<vmem>>, vector<1x128xf32>
    %27 = vector.shape_cast %26 : vector<1x128xf32> to vector<1x1x128xf32>
    %28 = vector.broadcast %27 : vector<1x1x128xf32> to vector<2x7x128xf32>
    %29 = arith.mulf %25, %28 : vector<2x7x128xf32>
    %c0_15 = arith.constant 0 : index
    %c0_16 = arith.constant 0 : index
    %30 = vector.load %arg5[%c0_15, %c0_16] : memref<1x128xf32, #tpu.memory_space<vmem>>, vector<1x128xf32>
    %31 = vector.shape_cast %30 : vector<1x128xf32> to vector<1x1x128xf32>
    %32 = vector.broadcast %31 : vector<1x1x128xf32> to vector<2x7x128xf32>
    %33 = arith.addf %29, %32 : vector<2x7x128xf32>
    %34 = vector.shape_cast %6 : vector<2x128xf32> to vector<2x1x128xf32>
    %35 = tpu.concatenate %34, %33 in 1 : vector<2x1x128xf32>, vector<2x7x128xf32> -> vector<2x8x128xf32>
    %36 = vector.shape_cast %35 : vector<2x8x128xf32> to vector<16x128xf32>
    %37 = arith.truncf %36 : vector<16x128xf32> to vector<16x128xbf16>
    %c0_17 = arith.constant 0 : index
    %c0_18 = arith.constant 0 : index
    %38 = vector.load %arg6[%c0_17, %c0_18] : memref<128x384xbf16, #tpu.memory_space<vmem>>, vector<128x384xbf16>
    %cst_19 = arith.constant dense<0.000000e+00> : vector<16x384xf32>
    %39 = tpu.matmul %37, %38, %cst_19 {dimension_numbers = #tpu.dot_dimension_numbers<[1], [0], [0], [1], [0, 0, 1, 1], [], []>} : vector<16x128xbf16>, vector<128x384xbf16>, vector<16x384xf32> -> vector<16x384xf32>
    %c0_20 = arith.constant 0 : index
    %c0_21 = arith.constant 0 : index
    %40 = vector.load %arg7[%c0_20, %c0_21] : memref<1x384xf32, #tpu.memory_space<vmem>>, vector<1x384xf32>
    %41 = vector.broadcast %40 : vector<1x384xf32> to vector<16x384xf32>
    %42 = arith.addf %39, %41 : vector<16x384xf32>
    %43 = vector.shape_cast %42 : vector<16x384xf32> to vector<2x8x384xf32>
    %c0_22 = arith.constant 0 : index
    %c0_23 = arith.constant 0 : index
    %44 = vector.load %arg8[%c0_22, %c0_23] : memref<128x384xbf16, #tpu.memory_space<vmem>>, vector<128x384xbf16>
    %c0_24 = arith.constant 0 : index
    %c0_25 = arith.constant 0 : index
    %45 = vector.load %arg9[%c0_24, %c0_25] : memref<1x128xf32, #tpu.memory_space<vmem>>, vector<1x128xf32>
    %46 = vector.shape_cast %45 : vector<1x128xf32> to vector<1x128xf32>
    %47 = vector.broadcast %46 : vector<1x128xf32> to vector<2x128xf32>
    %cst_26 = arith.constant 0.000000e+00 : f32
    %48 = vector.broadcast %cst_26 : f32 to vector<2x128xf32>
    %49 = arith.truncf %48 : vector<2x128xf32> to vector<2x128xbf16>
    %cst_27 = arith.constant dense<0.000000e+00> : vector<2x384xf32>
    %50 = tpu.matmul %49, %44, %cst_27 {dimension_numbers = #tpu.dot_dimension_numbers<[1], [0], [0], [1], [0, 0, 1, 1], [], []>} : vector<2x128xbf16>, vector<128x384xbf16>, vector<2x384xf32> -> vector<2x384xf32>
    %51 = vector.extract_strided_slice %43 {offsets = [0, 0, 0], sizes = [2, 1, 384], strides = [1, 1, 1]} : vector<2x8x384xf32> to vector<2x1x384xf32>
    %52 = vector.shape_cast %51 : vector<2x1x384xf32> to vector<2x384xf32>
    %53 = vector.extract_strided_slice %52 {offsets = [0, 0], sizes = [2, 128], strides = [1, 1]} : vector<2x384xf32> to vector<2x128xf32>
    %54 = vector.extract_strided_slice %50 {offsets = [0, 0], sizes = [2, 128], strides = [1, 1]} : vector<2x384xf32> to vector<2x128xf32>
    %55 = arith.addf %53, %54 : vector<2x128xf32>
    %56 = arith.negf %55 : vector<2x128xf32>
    %57 = math.exp %56 : vector<2x128xf32>
    %cst_28 = arith.constant 1.000000e+00 : f32
    %58 = vector.broadcast %cst_28 : f32 to vector<2x128xf32>
    %59 = arith.addf %58, %57 : vector<2x128xf32>
    %60 = arith.divf %58, %59 : vector<2x128xf32>
    %61 = vector.extract_strided_slice %52 {offsets = [0, 128], sizes = [2, 128], strides = [1, 1]} : vector<2x384xf32> to vector<2x128xf32>
    %62 = vector.extract_strided_slice %50 {offsets = [0, 128], sizes = [2, 128], strides = [1, 1]} : vector<2x384xf32> to vector<2x128xf32>
    %63 = arith.addf %61, %62 : vector<2x128xf32>
    %64 = arith.negf %63 : vector<2x128xf32>
    %65 = math.exp %64 : vector<2x128xf32>
    %cst_29 = arith.constant 1.000000e+00 : f32
    %66 = vector.broadcast %cst_29 : f32 to vector<2x128xf32>
    %67 = arith.addf %66, %65 : vector<2x128xf32>
    %68 = arith.divf %66, %67 : vector<2x128xf32>
    %69 = vector.extract_strided_slice %52 {offsets = [0, 256], sizes = [2, 128], strides = [1, 1]} : vector<2x384xf32> to vector<2x128xf32>
    %70 = vector.extract_strided_slice %50 {offsets = [0, 256], sizes = [2, 128], strides = [1, 1]} : vector<2x384xf32> to vector<2x128xf32>
    %71 = arith.addf %70, %47 : vector<2x128xf32>
    %72 = arith.mulf %60, %71 : vector<2x128xf32>
    %73 = arith.addf %69, %72 : vector<2x128xf32>
    %74 = math.tanh %73 : vector<2x128xf32>
    %cst_30 = arith.constant 1.000000e+00 : f32
    %75 = vector.broadcast %cst_30 : f32 to vector<2x128xf32>
    %76 = arith.subf %75, %68 : vector<2x128xf32>
    %77 = arith.mulf %76, %74 : vector<2x128xf32>
    %78 = arith.mulf %68, %48 : vector<2x128xf32>
    %79 = arith.addf %77, %78 : vector<2x128xf32>
    %80 = arith.truncf %79 : vector<2x128xf32> to vector<2x128xbf16>
    %cst_31 = arith.constant dense<0.000000e+00> : vector<2x384xf32>
    %81 = tpu.matmul %80, %44, %cst_31 {dimension_numbers = #tpu.dot_dimension_numbers<[1], [0], [0], [1], [0, 0, 1, 1], [], []>} : vector<2x128xbf16>, vector<128x384xbf16>, vector<2x384xf32> -> vector<2x384xf32>
    %82 = vector.extract_strided_slice %43 {offsets = [0, 1, 0], sizes = [2, 1, 384], strides = [1, 1, 1]} : vector<2x8x384xf32> to vector<2x1x384xf32>
    %83 = vector.shape_cast %82 : vector<2x1x384xf32> to vector<2x384xf32>
    %84 = vector.extract_strided_slice %83 {offsets = [0, 0], sizes = [2, 128], strides = [1, 1]} : vector<2x384xf32> to vector<2x128xf32>
    %85 = vector.extract_strided_slice %81 {offsets = [0, 0], sizes = [2, 128], strides = [1, 1]} : vector<2x384xf32> to vector<2x128xf32>
    %86 = arith.addf %84, %85 : vector<2x128xf32>
    %87 = arith.negf %86 : vector<2x128xf32>
    %88 = math.exp %87 : vector<2x128xf32>
    %cst_32 = arith.constant 1.000000e+00 : f32
    %89 = vector.broadcast %cst_32 : f32 to vector<2x128xf32>
    %90 = arith.addf %89, %88 : vector<2x128xf32>
    %91 = arith.divf %89, %90 : vector<2x128xf32>
    %92 = vector.extract_strided_slice %83 {offsets = [0, 128], sizes = [2, 128], strides = [1, 1]} : vector<2x384xf32> to vector<2x128xf32>
    %93 = vector.extract_strided_slice %81 {offsets = [0, 128], sizes = [2, 128], strides = [1, 1]} : vector<2x384xf32> to vector<2x128xf32>
    %94 = arith.addf %92, %93 : vector<2x128xf32>
    %95 = arith.negf %94 : vector<2x128xf32>
    %96 = math.exp %95 : vector<2x128xf32>
    %cst_33 = arith.constant 1.000000e+00 : f32
    %97 = vector.broadcast %cst_33 : f32 to vector<2x128xf32>
    %98 = arith.addf %97, %96 : vector<2x128xf32>
    %99 = arith.divf %97, %98 : vector<2x128xf32>
    %100 = vector.extract_strided_slice %83 {offsets = [0, 256], sizes = [2, 128], strides = [1, 1]} : vector<2x384xf32> to vector<2x128xf32>
    %101 = vector.extract_strided_slice %81 {offsets = [0, 256], sizes = [2, 128], strides = [1, 1]} : vector<2x384xf32> to vector<2x128xf32>
    %102 = arith.addf %101, %47 : vector<2x128xf32>
    %103 = arith.mulf %91, %102 : vector<2x128xf32>
    %104 = arith.addf %100, %103 : vector<2x128xf32>
    %105 = math.tanh %104 : vector<2x128xf32>
    %cst_34 = arith.constant 1.000000e+00 : f32
    %106 = vector.broadcast %cst_34 : f32 to vector<2x128xf32>
    %107 = arith.subf %106, %99 : vector<2x128xf32>
    %108 = arith.mulf %107, %105 : vector<2x128xf32>
    %109 = arith.mulf %99, %79 : vector<2x128xf32>
    %110 = arith.addf %108, %109 : vector<2x128xf32>
    %111 = arith.truncf %110 : vector<2x128xf32> to vector<2x128xbf16>
    %cst_35 = arith.constant dense<0.000000e+00> : vector<2x384xf32>
    %112 = tpu.matmul %111, %44, %cst_35 {dimension_numbers = #tpu.dot_dimension_numbers<[1], [0], [0], [1], [0, 0, 1, 1], [], []>} : vector<2x128xbf16>, vector<128x384xbf16>, vector<2x384xf32> -> vector<2x384xf32>
    %113 = vector.extract_strided_slice %43 {offsets = [0, 2, 0], sizes = [2, 1, 384], strides = [1, 1, 1]} : vector<2x8x384xf32> to vector<2x1x384xf32>
    %114 = vector.shape_cast %113 : vector<2x1x384xf32> to vector<2x384xf32>
    %115 = vector.extract_strided_slice %114 {offsets = [0, 0], sizes = [2, 128], strides = [1, 1]} : vector<2x384xf32> to vector<2x128xf32>
    %116 = vector.extract_strided_slice %112 {offsets = [0, 0], sizes = [2, 128], strides = [1, 1]} : vector<2x384xf32> to vector<2x128xf32>
    %117 = arith.addf %115, %116 : vector<2x128xf32>
    %118 = arith.negf %117 : vector<2x128xf32>
    %119 = math.exp %118 : vector<2x128xf32>
    %cst_36 = arith.constant 1.000000e+00 : f32
    %120 = vector.broadcast %cst_36 : f32 to vector<2x128xf32>
    %121 = arith.addf %120, %119 : vector<2x128xf32>
    %122 = arith.divf %120, %121 : vector<2x128xf32>
    %123 = vector.extract_strided_slice %114 {offsets = [0, 128], sizes = [2, 128], strides = [1, 1]} : vector<2x384xf32> to vector<2x128xf32>
    %124 = vector.extract_strided_slice %112 {offsets = [0, 128], sizes = [2, 128], strides = [1, 1]} : vector<2x384xf32> to vector<2x128xf32>
    %125 = arith.addf %123, %124 : vector<2x128xf32>
    %126 = arith.negf %125 : vector<2x128xf32>
    %127 = math.exp %126 : vector<2x128xf32>
    %cst_37 = arith.constant 1.000000e+00 : f32
    %128 = vector.broadcast %cst_37 : f32 to vector<2x128xf32>
    %129 = arith.addf %128, %127 : vector<2x128xf32>
    %130 = arith.divf %128, %129 : vector<2x128xf32>
    %131 = vector.extract_strided_slice %114 {offsets = [0, 256], sizes = [2, 128], strides = [1, 1]} : vector<2x384xf32> to vector<2x128xf32>
    %132 = vector.extract_strided_slice %112 {offsets = [0, 256], sizes = [2, 128], strides = [1, 1]} : vector<2x384xf32> to vector<2x128xf32>
    %133 = arith.addf %132, %47 : vector<2x128xf32>
    %134 = arith.mulf %122, %133 : vector<2x128xf32>
    %135 = arith.addf %131, %134 : vector<2x128xf32>
    %136 = math.tanh %135 : vector<2x128xf32>
    %cst_38 = arith.constant 1.000000e+00 : f32
    %137 = vector.broadcast %cst_38 : f32 to vector<2x128xf32>
    %138 = arith.subf %137, %130 : vector<2x128xf32>
    %139 = arith.mulf %138, %136 : vector<2x128xf32>
    %140 = arith.mulf %130, %110 : vector<2x128xf32>
    %141 = arith.addf %139, %140 : vector<2x128xf32>
    %142 = arith.truncf %141 : vector<2x128xf32> to vector<2x128xbf16>
    %cst_39 = arith.constant dense<0.000000e+00> : vector<2x384xf32>
    %143 = tpu.matmul %142, %44, %cst_39 {dimension_numbers = #tpu.dot_dimension_numbers<[1], [0], [0], [1], [0, 0, 1, 1], [], []>} : vector<2x128xbf16>, vector<128x384xbf16>, vector<2x384xf32> -> vector<2x384xf32>
    %144 = vector.extract_strided_slice %43 {offsets = [0, 3, 0], sizes = [2, 1, 384], strides = [1, 1, 1]} : vector<2x8x384xf32> to vector<2x1x384xf32>
    %145 = vector.shape_cast %144 : vector<2x1x384xf32> to vector<2x384xf32>
    %146 = vector.extract_strided_slice %145 {offsets = [0, 0], sizes = [2, 128], strides = [1, 1]} : vector<2x384xf32> to vector<2x128xf32>
    %147 = vector.extract_strided_slice %143 {offsets = [0, 0], sizes = [2, 128], strides = [1, 1]} : vector<2x384xf32> to vector<2x128xf32>
    %148 = arith.addf %146, %147 : vector<2x128xf32>
    %149 = arith.negf %148 : vector<2x128xf32>
    %150 = math.exp %149 : vector<2x128xf32>
    %cst_40 = arith.constant 1.000000e+00 : f32
    %151 = vector.broadcast %cst_40 : f32 to vector<2x128xf32>
    %152 = arith.addf %151, %150 : vector<2x128xf32>
    %153 = arith.divf %151, %152 : vector<2x128xf32>
    %154 = vector.extract_strided_slice %145 {offsets = [0, 128], sizes = [2, 128], strides = [1, 1]} : vector<2x384xf32> to vector<2x128xf32>
    %155 = vector.extract_strided_slice %143 {offsets = [0, 128], sizes = [2, 128], strides = [1, 1]} : vector<2x384xf32> to vector<2x128xf32>
    %156 = arith.addf %154, %155 : vector<2x128xf32>
    %157 = arith.negf %156 : vector<2x128xf32>
    %158 = math.exp %157 : vector<2x128xf32>
    %cst_41 = arith.constant 1.000000e+00 : f32
    %159 = vector.broadcast %cst_41 : f32 to vector<2x128xf32>
    %160 = arith.addf %159, %158 : vector<2x128xf32>
    %161 = arith.divf %159, %160 : vector<2x128xf32>
    %162 = vector.extract_strided_slice %145 {offsets = [0, 256], sizes = [2, 128], strides = [1, 1]} : vector<2x384xf32> to vector<2x128xf32>
    %163 = vector.extract_strided_slice %143 {offsets = [0, 256], sizes = [2, 128], strides = [1, 1]} : vector<2x384xf32> to vector<2x128xf32>
    %164 = arith.addf %163, %47 : vector<2x128xf32>
    %165 = arith.mulf %153, %164 : vector<2x128xf32>
    %166 = arith.addf %162, %165 : vector<2x128xf32>
    %167 = math.tanh %166 : vector<2x128xf32>
    %cst_42 = arith.constant 1.000000e+00 : f32
    %168 = vector.broadcast %cst_42 : f32 to vector<2x128xf32>
    %169 = arith.subf %168, %161 : vector<2x128xf32>
    %170 = arith.mulf %169, %167 : vector<2x128xf32>
    %171 = arith.mulf %161, %141 : vector<2x128xf32>
    %172 = arith.addf %170, %171 : vector<2x128xf32>
    %173 = arith.truncf %172 : vector<2x128xf32> to vector<2x128xbf16>
    %cst_43 = arith.constant dense<0.000000e+00> : vector<2x384xf32>
    %174 = tpu.matmul %173, %44, %cst_43 {dimension_numbers = #tpu.dot_dimension_numbers<[1], [0], [0], [1], [0, 0, 1, 1], [], []>} : vector<2x128xbf16>, vector<128x384xbf16>, vector<2x384xf32> -> vector<2x384xf32>
    %175 = vector.extract_strided_slice %43 {offsets = [0, 4, 0], sizes = [2, 1, 384], strides = [1, 1, 1]} : vector<2x8x384xf32> to vector<2x1x384xf32>
    %176 = vector.shape_cast %175 : vector<2x1x384xf32> to vector<2x384xf32>
    %177 = vector.extract_strided_slice %176 {offsets = [0, 0], sizes = [2, 128], strides = [1, 1]} : vector<2x384xf32> to vector<2x128xf32>
    %178 = vector.extract_strided_slice %174 {offsets = [0, 0], sizes = [2, 128], strides = [1, 1]} : vector<2x384xf32> to vector<2x128xf32>
    %179 = arith.addf %177, %178 : vector<2x128xf32>
    %180 = arith.negf %179 : vector<2x128xf32>
    %181 = math.exp %180 : vector<2x128xf32>
    %cst_44 = arith.constant 1.000000e+00 : f32
    %182 = vector.broadcast %cst_44 : f32 to vector<2x128xf32>
    %183 = arith.addf %182, %181 : vector<2x128xf32>
    %184 = arith.divf %182, %183 : vector<2x128xf32>
    %185 = vector.extract_strided_slice %176 {offsets = [0, 128], sizes = [2, 128], strides = [1, 1]} : vector<2x384xf32> to vector<2x128xf32>
    %186 = vector.extract_strided_slice %174 {offsets = [0, 128], sizes = [2, 128], strides = [1, 1]} : vector<2x384xf32> to vector<2x128xf32>
    %187 = arith.addf %185, %186 : vector<2x128xf32>
    %188 = arith.negf %187 : vector<2x128xf32>
    %189 = math.exp %188 : vector<2x128xf32>
    %cst_45 = arith.constant 1.000000e+00 : f32
    %190 = vector.broadcast %cst_45 : f32 to vector<2x128xf32>
    %191 = arith.addf %190, %189 : vector<2x128xf32>
    %192 = arith.divf %190, %191 : vector<2x128xf32>
    %193 = vector.extract_strided_slice %176 {offsets = [0, 256], sizes = [2, 128], strides = [1, 1]} : vector<2x384xf32> to vector<2x128xf32>
    %194 = vector.extract_strided_slice %174 {offsets = [0, 256], sizes = [2, 128], strides = [1, 1]} : vector<2x384xf32> to vector<2x128xf32>
    %195 = arith.addf %194, %47 : vector<2x128xf32>
    %196 = arith.mulf %184, %195 : vector<2x128xf32>
    %197 = arith.addf %193, %196 : vector<2x128xf32>
    %198 = math.tanh %197 : vector<2x128xf32>
    %cst_46 = arith.constant 1.000000e+00 : f32
    %199 = vector.broadcast %cst_46 : f32 to vector<2x128xf32>
    %200 = arith.subf %199, %192 : vector<2x128xf32>
    %201 = arith.mulf %200, %198 : vector<2x128xf32>
    %202 = arith.mulf %192, %172 : vector<2x128xf32>
    %203 = arith.addf %201, %202 : vector<2x128xf32>
    %204 = arith.truncf %203 : vector<2x128xf32> to vector<2x128xbf16>
    %cst_47 = arith.constant dense<0.000000e+00> : vector<2x384xf32>
    %205 = tpu.matmul %204, %44, %cst_47 {dimension_numbers = #tpu.dot_dimension_numbers<[1], [0], [0], [1], [0, 0, 1, 1], [], []>} : vector<2x128xbf16>, vector<128x384xbf16>, vector<2x384xf32> -> vector<2x384xf32>
    %206 = vector.extract_strided_slice %43 {offsets = [0, 5, 0], sizes = [2, 1, 384], strides = [1, 1, 1]} : vector<2x8x384xf32> to vector<2x1x384xf32>
    %207 = vector.shape_cast %206 : vector<2x1x384xf32> to vector<2x384xf32>
    %208 = vector.extract_strided_slice %207 {offsets = [0, 0], sizes = [2, 128], strides = [1, 1]} : vector<2x384xf32> to vector<2x128xf32>
    %209 = vector.extract_strided_slice %205 {offsets = [0, 0], sizes = [2, 128], strides = [1, 1]} : vector<2x384xf32> to vector<2x128xf32>
    %210 = arith.addf %208, %209 : vector<2x128xf32>
    %211 = arith.negf %210 : vector<2x128xf32>
    %212 = math.exp %211 : vector<2x128xf32>
    %cst_48 = arith.constant 1.000000e+00 : f32
    %213 = vector.broadcast %cst_48 : f32 to vector<2x128xf32>
    %214 = arith.addf %213, %212 : vector<2x128xf32>
    %215 = arith.divf %213, %214 : vector<2x128xf32>
    %216 = vector.extract_strided_slice %207 {offsets = [0, 128], sizes = [2, 128], strides = [1, 1]} : vector<2x384xf32> to vector<2x128xf32>
    %217 = vector.extract_strided_slice %205 {offsets = [0, 128], sizes = [2, 128], strides = [1, 1]} : vector<2x384xf32> to vector<2x128xf32>
    %218 = arith.addf %216, %217 : vector<2x128xf32>
    %219 = arith.negf %218 : vector<2x128xf32>
    %220 = math.exp %219 : vector<2x128xf32>
    %cst_49 = arith.constant 1.000000e+00 : f32
    %221 = vector.broadcast %cst_49 : f32 to vector<2x128xf32>
    %222 = arith.addf %221, %220 : vector<2x128xf32>
    %223 = arith.divf %221, %222 : vector<2x128xf32>
    %224 = vector.extract_strided_slice %207 {offsets = [0, 256], sizes = [2, 128], strides = [1, 1]} : vector<2x384xf32> to vector<2x128xf32>
    %225 = vector.extract_strided_slice %205 {offsets = [0, 256], sizes = [2, 128], strides = [1, 1]} : vector<2x384xf32> to vector<2x128xf32>
    %226 = arith.addf %225, %47 : vector<2x128xf32>
    %227 = arith.mulf %215, %226 : vector<2x128xf32>
    %228 = arith.addf %224, %227 : vector<2x128xf32>
    %229 = math.tanh %228 : vector<2x128xf32>
    %cst_50 = arith.constant 1.000000e+00 : f32
    %230 = vector.broadcast %cst_50 : f32 to vector<2x128xf32>
    %231 = arith.subf %230, %223 : vector<2x128xf32>
    %232 = arith.mulf %231, %229 : vector<2x128xf32>
    %233 = arith.mulf %223, %203 : vector<2x128xf32>
    %234 = arith.addf %232, %233 : vector<2x128xf32>
    %235 = arith.truncf %234 : vector<2x128xf32> to vector<2x128xbf16>
    %cst_51 = arith.constant dense<0.000000e+00> : vector<2x384xf32>
    %236 = tpu.matmul %235, %44, %cst_51 {dimension_numbers = #tpu.dot_dimension_numbers<[1], [0], [0], [1], [0, 0, 1, 1], [], []>} : vector<2x128xbf16>, vector<128x384xbf16>, vector<2x384xf32> -> vector<2x384xf32>
    %237 = vector.extract_strided_slice %43 {offsets = [0, 6, 0], sizes = [2, 1, 384], strides = [1, 1, 1]} : vector<2x8x384xf32> to vector<2x1x384xf32>
    %238 = vector.shape_cast %237 : vector<2x1x384xf32> to vector<2x384xf32>
    %239 = vector.extract_strided_slice %238 {offsets = [0, 0], sizes = [2, 128], strides = [1, 1]} : vector<2x384xf32> to vector<2x128xf32>
    %240 = vector.extract_strided_slice %236 {offsets = [0, 0], sizes = [2, 128], strides = [1, 1]} : vector<2x384xf32> to vector<2x128xf32>
    %241 = arith.addf %239, %240 : vector<2x128xf32>
    %242 = arith.negf %241 : vector<2x128xf32>
    %243 = math.exp %242 : vector<2x128xf32>
    %cst_52 = arith.constant 1.000000e+00 : f32
    %244 = vector.broadcast %cst_52 : f32 to vector<2x128xf32>
    %245 = arith.addf %244, %243 : vector<2x128xf32>
    %246 = arith.divf %244, %245 : vector<2x128xf32>
    %247 = vector.extract_strided_slice %238 {offsets = [0, 128], sizes = [2, 128], strides = [1, 1]} : vector<2x384xf32> to vector<2x128xf32>
    %248 = vector.extract_strided_slice %236 {offsets = [0, 128], sizes = [2, 128], strides = [1, 1]} : vector<2x384xf32> to vector<2x128xf32>
    %249 = arith.addf %247, %248 : vector<2x128xf32>
    %250 = arith.negf %249 : vector<2x128xf32>
    %251 = math.exp %250 : vector<2x128xf32>
    %cst_53 = arith.constant 1.000000e+00 : f32
    %252 = vector.broadcast %cst_53 : f32 to vector<2x128xf32>
    %253 = arith.addf %252, %251 : vector<2x128xf32>
    %254 = arith.divf %252, %253 : vector<2x128xf32>
    %255 = vector.extract_strided_slice %238 {offsets = [0, 256], sizes = [2, 128], strides = [1, 1]} : vector<2x384xf32> to vector<2x128xf32>
    %256 = vector.extract_strided_slice %236 {offsets = [0, 256], sizes = [2, 128], strides = [1, 1]} : vector<2x384xf32> to vector<2x128xf32>
    %257 = arith.addf %256, %47 : vector<2x128xf32>
    %258 = arith.mulf %246, %257 : vector<2x128xf32>
    %259 = arith.addf %255, %258 : vector<2x128xf32>
    %260 = math.tanh %259 : vector<2x128xf32>
    %cst_54 = arith.constant 1.000000e+00 : f32
    %261 = vector.broadcast %cst_54 : f32 to vector<2x128xf32>
    %262 = arith.subf %261, %254 : vector<2x128xf32>
    %263 = arith.mulf %262, %260 : vector<2x128xf32>
    %264 = arith.mulf %254, %234 : vector<2x128xf32>
    %265 = arith.addf %263, %264 : vector<2x128xf32>
    %266 = arith.truncf %265 : vector<2x128xf32> to vector<2x128xbf16>
    %cst_55 = arith.constant dense<0.000000e+00> : vector<2x384xf32>
    %267 = tpu.matmul %266, %44, %cst_55 {dimension_numbers = #tpu.dot_dimension_numbers<[1], [0], [0], [1], [0, 0, 1, 1], [], []>} : vector<2x128xbf16>, vector<128x384xbf16>, vector<2x384xf32> -> vector<2x384xf32>
    %268 = vector.extract_strided_slice %43 {offsets = [0, 7, 0], sizes = [2, 1, 384], strides = [1, 1, 1]} : vector<2x8x384xf32> to vector<2x1x384xf32>
    %269 = vector.shape_cast %268 : vector<2x1x384xf32> to vector<2x384xf32>
    %270 = vector.extract_strided_slice %269 {offsets = [0, 0], sizes = [2, 128], strides = [1, 1]} : vector<2x384xf32> to vector<2x128xf32>
    %271 = vector.extract_strided_slice %267 {offsets = [0, 0], sizes = [2, 128], strides = [1, 1]} : vector<2x384xf32> to vector<2x128xf32>
    %272 = arith.addf %270, %271 : vector<2x128xf32>
    %273 = arith.negf %272 : vector<2x128xf32>
    %274 = math.exp %273 : vector<2x128xf32>
    %cst_56 = arith.constant 1.000000e+00 : f32
    %275 = vector.broadcast %cst_56 : f32 to vector<2x128xf32>
    %276 = arith.addf %275, %274 : vector<2x128xf32>
    %277 = arith.divf %275, %276 : vector<2x128xf32>
    %278 = vector.extract_strided_slice %269 {offsets = [0, 128], sizes = [2, 128], strides = [1, 1]} : vector<2x384xf32> to vector<2x128xf32>
    %279 = vector.extract_strided_slice %267 {offsets = [0, 128], sizes = [2, 128], strides = [1, 1]} : vector<2x384xf32> to vector<2x128xf32>
    %280 = arith.addf %278, %279 : vector<2x128xf32>
    %281 = arith.negf %280 : vector<2x128xf32>
    %282 = math.exp %281 : vector<2x128xf32>
    %cst_57 = arith.constant 1.000000e+00 : f32
    %283 = vector.broadcast %cst_57 : f32 to vector<2x128xf32>
    %284 = arith.addf %283, %282 : vector<2x128xf32>
    %285 = arith.divf %283, %284 : vector<2x128xf32>
    %286 = vector.extract_strided_slice %269 {offsets = [0, 256], sizes = [2, 128], strides = [1, 1]} : vector<2x384xf32> to vector<2x128xf32>
    %287 = vector.extract_strided_slice %267 {offsets = [0, 256], sizes = [2, 128], strides = [1, 1]} : vector<2x384xf32> to vector<2x128xf32>
    %288 = arith.addf %287, %47 : vector<2x128xf32>
    %289 = arith.mulf %277, %288 : vector<2x128xf32>
    %290 = arith.addf %286, %289 : vector<2x128xf32>
    %291 = math.tanh %290 : vector<2x128xf32>
    %cst_58 = arith.constant 1.000000e+00 : f32
    %292 = vector.broadcast %cst_58 : f32 to vector<2x128xf32>
    %293 = arith.subf %292, %285 : vector<2x128xf32>
    %294 = arith.mulf %293, %291 : vector<2x128xf32>
    %295 = arith.mulf %285, %265 : vector<2x128xf32>
    %296 = arith.addf %294, %295 : vector<2x128xf32>
    %297 = vector.shape_cast %79 : vector<2x128xf32> to vector<2x1x128xf32>
    %298 = vector.shape_cast %110 : vector<2x128xf32> to vector<2x1x128xf32>
    %299 = vector.shape_cast %141 : vector<2x128xf32> to vector<2x1x128xf32>
    %300 = vector.shape_cast %172 : vector<2x128xf32> to vector<2x1x128xf32>
    %301 = vector.shape_cast %203 : vector<2x128xf32> to vector<2x1x128xf32>
    %302 = vector.shape_cast %234 : vector<2x128xf32> to vector<2x1x128xf32>
    %303 = vector.shape_cast %265 : vector<2x128xf32> to vector<2x1x128xf32>
    %304 = vector.shape_cast %296 : vector<2x128xf32> to vector<2x1x128xf32>
    %305 = tpu.concatenate %297, %298, %299, %300, %301, %302, %303, %304 in 1 : vector<2x1x128xf32>, vector<2x1x128xf32>, vector<2x1x128xf32>, vector<2x1x128xf32>, vector<2x1x128xf32>, vector<2x1x128xf32>, vector<2x1x128xf32>, vector<2x1x128xf32> -> vector<2x8x128xf32>
    %306 = arith.truncf %305 : vector<2x8x128xf32> to vector<2x8x128xbf16>
    %307 = vector.shape_cast %306 : vector<2x8x128xbf16> to vector<16x128xbf16>
    %c0_59 = arith.constant 0 : index
    %c0_60 = arith.constant 0 : index
    %308 = vector.load %arg10[%c0_59, %c0_60] : memref<16x128xbf16, #tpu.memory_space<vmem>>, vector<16x128xbf16>
    tpu.vector_store %arg10[%c0_59, %c0_60], %307 {strides = array<i32>} : memref<16x128xbf16, #tpu.memory_space<vmem>>, vector<16x128xbf16>,
    return
  }
}

</mosaic_0001>

<llo_original>
// kernel: video_text_forward.3
$region0: #{video_text_forward.3}
  #allocation0 [shape = 'u32[]', space=smem, size = 0x4, offset = 0x4, fixed_abs, tag = 'smem constant byte address 0x4 - core index']
  #allocation1 [shape = 'u32[144,128]{1,0:T(1,128)}', space=vmem, size = 0x12000, scoped, tag = 'internal scratch']
  %s0 = inlined_call_operand.vmem [shape: bf16[16,128], index: 0, kind: input, shape index: {}]
  %s1 = inlined_call_operand.vmem [shape: bf16[128,1024], index: 1, kind: input, shape index: {}]
  %s2 = inlined_call_operand.vmem [shape: f32[1,1024], index: 2, kind: input, shape index: {}]
  %s3 = inlined_call_operand.hbm [shape: f32[16,1024], index: 3, kind: output, shape index: {}]
  %s4 = sld [smem:[#allocation0]]
  $region68: #{video_text_forward.3} parent=0
    _
  %s6 = ssub.s32 1, %s4
  %s7 = scalar_select 0, %s6, %s4
  $region1: #{video_text_forward.3} parent=0
    #allocation2 [shape = 'u8[262144]{0}', space=vmem, size = 0x40000, scoped, tag = 'input window, operand 1']
    #allocation3 [shape = 'u8[65536]{0}', space=vmem, size = 0x10000, scoped, tag = 'output window, operand 0']
    #allocation4 [shape = 's32[2]{0}', space=sflag, size = 0x8, scoped, tag = 'scoped memory for video_text_forward.3']
    %8 = vsyncpa [#allocation4], 0
    %s9 = scalar_lea.sflag [#allocation4], 1
    %10 = vsyncpa %s9, 0
    loop: start=0, step=1, limit=4
    $region2: #{video_text_forward.3} parent=1 // loop_pre_header
      _
    $region3: #{video_text_forward.3} parent=1 // loop_header
      %s12 = sphi 0, %s16
      %p13 = scmp.ge.s32.totalorder %s12, 4
      %s20 = sphi 0, %s20
      %s22 = sphi 0, %s20
      %s23 = sphi 0, %s22
      %s37 = sphi 0, %s23
      %s43 = sphi 0, %s45
      %s46 = sphi 0, %s43
      %s47 = sphi 0, %s46
      %s63 = sphi 0, %s47
      %s69 = sphi 0, %s71
      %s72 = sphi 0, %s69
      %s73 = sphi 0, %s72
      %s89 = sphi 0, %s73
      %s95 = sphi 0, %s97
      %s98 = sphi 0, %s95
      %s99 = sphi 0, %s98
      %s115 = sphi 0, %s99
    $region4: #{video_text_forward.3} parent=1 // loop_header_branch
      %15 = sbr.rel (%p13) target = $region8
    $region5: #{video_text_forward.3} parent=1 // loop_body
      %s17 = ssub.s32 %s12, 1
      %s18 = ssub.s32 %s12, 2
      %s19 = sadd.s32 %s12, 1
      %s21 = sadd.s32 %s20, 1
      %p24 = scmp.eq.s32.totalorder %s12, 1
      %p25 = scmp.ne.s32.totalorder %s20, %s22
      %p26 = scmp.eq.s32.totalorder %s12, 0
      %p27 = por %p25, %p26
      %p28 = scmp.ne.s32.totalorder %s20, %s22
      %p29 = scmp.eq.s32.totalorder %s17, 1
      %p30 = por %p28, %p29
      %p31 = scmp.ne.s32.totalorder %s22, %s23
      %p32 = scmp.eq.s32.totalorder %s17, 0
      %p33 = por %p31, %p32
      %p34 = scmp.ne.s32.totalorder %s22, %s23
      %p35 = scmp.eq.s32.totalorder %s18, 1
      %p36 = por %p34, %p35
      %p38 = scmp.ne.s32.totalorder %s23, %s37
      %p39 = scmp.eq.s32.totalorder %s18, 0
      %p40 = por %p38, %p39
      %s41 = ssub.s32 %s12, %s19
      %p42 = scmp.eq.s32.totalorder %s41, 0
      %s44 = sadd.s32 %s43, 1
      %s45 = scalar_select %p42, %s43, %s44
      %p48 = pneg %p42
      %p49 = scmp.eq.s32.totalorder %s12, 1
      %p50 = por %p48, %p49
      %p51 = scmp.ne.s32.totalorder %s43, %s46
      %p52 = scmp.eq.s32.totalorder %s12, 0
      %p53 = por %p51, %p52
      %p54 = scmp.ne.s32.totalorder %s43, %s46
      %p55 = scmp.eq.s32.totalorder %s17, 1
      %p56 = por %p54, %p55
      %p57 = scmp.ne.s32.totalorder %s46, %s47
      %p58 = scmp.eq.s32.totalorder %s17, 0
      %p59 = por %p57, %p58
      %p60 = scmp.ne.s32.totalorder %s46, %s47
      %p61 = scmp.eq.s32.totalorder %s18, 1
      %p62 = por %p60, %p61
      %p64 = scmp.ne.s32.totalorder %s47, %s63
      %p65 = scmp.eq.s32.totalorder %s18, 0
      %p66 = por %p64, %p65
      %s67 = ssub.s32 %s12, %s19
      %p68 = scmp.eq.s32.totalorder %s67, 0
      %s70 = sadd.s32 %s69, 1
      %s71 = scalar_select %p68, %s69, %s70
      %p74 = pneg %p68
      %p75 = scmp.eq.s32.totalorder %s12, 1
      %p76 = por %p74, %p75
      %p77 = scmp.ne.s32.totalorder %s69, %s72
      %p78 = scmp.eq.s32.totalorder %s12, 0
      %p79 = por %p77, %p78
      %p80 = scmp.ne.s32.totalorder %s69, %s72
      %p81 = scmp.eq.s32.totalorder %s17, 1
      %p82 = por %p80, %p81
      %p83 = scmp.ne.s32.totalorder %s72, %s73
      %p84 = scmp.eq.s32.totalorder %s17, 0
      %p85 = por %p83, %p84
      %p86 = scmp.ne.s32.totalorder %s72, %s73
      %p87 = scmp.eq.s32.totalorder %s18, 1
      %p88 = por %p86, %p87
      %p90 = scmp.ne.s32.totalorder %s73, %s89
      %p91 = scmp.eq.s32.totalorder %s18, 0
      %p92 = por %p90, %p91
      %s93 = ssub.s32 %s12, %s19
      %p94 = scmp.eq.s32.totalorder %s93, 0
      %s96 = sadd.s32 %s95, 1
      %s97 = scalar_select %p94, %s95, %s96
      %p100 = pneg %p94
      %p101 = scmp.eq.s32.totalorder %s12, 1
      %p102 = por %p100, %p101
      %p103 = scmp.ne.s32.totalorder %s95, %s98
      %p104 = scmp.eq.s32.totalorder %s12, 0
      %p105 = por %p103, %p104
      %p106 = scmp.ne.s32.totalorder %s95, %s98
      %p107 = scmp.eq.s32.totalorder %s17, 1
      %p108 = por %p106, %p107
      %p109 = scmp.ne.s32.totalorder %s98, %s99
      %p110 = scmp.eq.s32.totalorder %s17, 0
      %p111 = por %p109, %p110
      %p112 = scmp.ne.s32.totalorder %s98, %s99
      %p113 = scmp.eq.s32.totalorder %s18, 1
      %p114 = por %p112, %p113
      %p116 = scmp.ne.s32.totalorder %s99, %s115
      %p117 = scmp.eq.s32.totalorder %s18, 0
      %p118 = por %p116, %p117
      %p119 = scmp.le.s32.totalorder 1, %s12
      %p120 = scmp.lt.s32.totalorder %s12, 3
      %p121 = pnand %p119, %p120
      %p122 = pneg %p121
      // Predicated region
      $region9: #{video_text_forward.3} parent=5 // pred_check
        _
      $region10: #{video_text_forward.3} parent=5 // pred_check_branch
        %124 = sbr.rel (%p121) target = $region12
      $region11: #{video_text_forward.3} parent=5 // pred_region
        %s125 = ssub.s32 %s12, 1
        // Predicated region
        $region13: #{video_text_forward.3} parent=11 // pred_check
          %p126 = pneg %p33
        $region14: #{video_text_forward.3} parent=11 // pred_check_branch
          %128 = sbr.rel (%p126) target = $region16
        $region15: #{video_text_forward.3} parent=11 // pred_region
          _
        $region16: #{video_text_forward.3} parent=11 // pred_fallthru
          _
      $region12: #{video_text_forward.3} parent=5 // pred_fallthru
        _
      %p129 = scmp.lt.s32.totalorder %s12, 2
      // Predicated region
      $region17: #{video_text_forward.3} parent=5 // pred_check
        %p130 = pneg %p129
      $region18: #{video_text_forward.3} parent=5 // pred_check_branch
        %132 = sbr.rel (%p130) target = $region20
      $region19: #{video_text_forward.3} parent=5 // pred_region
        // Predicated region
        $region21: #{video_text_forward.3} parent=19 // pred_check
          %p133 = pneg %p53
        $region22: #{video_text_forward.3} parent=19 // pred_check_branch
          %135 = sbr.rel (%p133) target = $region24
        $region23: #{video_text_forward.3} parent=19 // pred_region
          %s136 = sand.u32 %s43, 1
          %s137 = sand.u32 %s43, 1
          %s138 = smul.addr %s137, 256
          %s139 = scalar_lea.vmem [#allocation2], %s138
          %s140 = smul.u32 4, %s12
          %s141 = smul.addr %s140, 4
          %s142 = scalar_lea.vmem %s1, %s141
          // Predicated region
          $region25: #{video_text_forward.3} parent=23 // pred_check
            _
          $region26: #{video_text_forward.3} parent=23 // pred_check_branch
            %144 = sbr.rel (0) target = $region28
          $region27: #{video_text_forward.3} parent=23 // pred_region
            // Predicated region
            $region29: #{video_text_forward.3} parent=27 // pred_check
              _
            $region30: #{video_text_forward.3} parent=27 // pred_check_branch
              %146 = sbr.rel (0) target = $region32
            $region31: #{video_text_forward.3} parent=27 // pred_region
              loop: start=0, step=1, limit=1
              $region33: #{video_text_forward.3} parent=31 // loop_pre_header
                _
              $region34: #{video_text_forward.3} parent=31 // loop_header
                %s148 = sphi 0, %s152
                %p149 = scmp.ge.s32.totalorder %s148, 1
                %s153 = sphi %s142, %s142
                %s154 = sphi %s139, %s139
              $region35: #{video_text_forward.3} parent=31 // loop_header_branch
                %151 = sbr.rel (%p149) target = $region39
              $region36: #{video_text_forward.3} parent=31 // loop_body
                %v155 = vld [vmem:[%s153] sm:$0xff]
                %156 = vst [vmem:[%s154] sm:$0xff] %v155
                %v157 = vld [vmem:[%s153 + $0x8] sm:$0xff]
                %158 = vst [vmem:[%s154 + $0x8] sm:$0xff] %v157
                %v159 = vld [vmem:[%s153 + $0x20] sm:$0xff]
                %160 = vst [vmem:[%s154 + $0x10] sm:$0xff] %v159
                %v161 = vld [vmem:[%s153 + $0x28] sm:$0xff]
                %162 = vst [vmem:[%s154 + $0x18] sm:$0xff] %v161
                %v163 = vld [vmem:[%s153 + $0x40] sm:$0xff]
                %164 = vst [vmem:[%s154 + $0x20] sm:$0xff] %v163
                %v165 = vld [vmem:[%s153 + $0x48] sm:$0xff]
                %166 = vst [vmem:[%s154 + $0x28] sm:$0xff] %v165
                %v167 = vld [vmem:[%s153 + $0x60] sm:$0xff]
                %168 = vst [vmem:[%s154 + $0x30] sm:$0xff] %v167
                %v169 = vld [vmem:[%s153 + $0x68] sm:$0xff]
                %170 = vst [vmem:[%s154 + $0x38] sm:$0xff] %v169
                %v171 = vld [vmem:[%s153 + $0x80] sm:$0xff]
                %172 = vst [vmem:[%s154 + $0x40] sm:$0xff] %v171
                %v173 = vld [vmem:[%s153 + $0x88] sm:$0xff]
                %174 = vst [vmem:[%s154 + $0x48] sm:$0xff] %v173
                %v175 = vld [vmem:[%s153 + $0xa0] sm:$0xff]
                %176 = vst [vmem:[%s154 + $0x50] sm:$0xff] %v175
                %v177 = vld [vmem:[%s153 + $0xa8] sm:$0xff]
                %178 = vst [vmem:[%s154 + $0x58] sm:$0xff] %v177
                %v179 = vld [vmem:[%s153 + $0xc0] sm:$0xff]
                %180 = vst [vmem:[%s154 + $0x60] sm:$0xff] %v179
                %v181 = vld [vmem:[%s153 + $0xc8] sm:$0xff]
                %182 = vst [vmem:[%s154 + $0x68] sm:$0xff] %v181
                %v183 = vld [vmem:[%s153 + $0xe0] sm:$0xff]
                %184 = vst [vmem:[%s154 + $0x70] sm:$0xff] %v183
                %v185 = vld [vmem:[%s153 + $0xe8] sm:$0xff]
                %186 = vst [vmem:[%s154 + $0x78] sm:$0xff] %v185
                %v187 = vld [vmem:[%s153 + $0x100] sm:$0xff]
                %188 = vst [vmem:[%s154 + $0x80] sm:$0xff] %v187
                %v189 = vld [vmem:[%s153 + $0x108] sm:$0xff]
                %190 = vst [vmem:[%s154 + $0x88] sm:$0xff] %v189
                %v191 = vld [vmem:[%s153 + $0x120] sm:$0xff]
                %192 = vst [vmem:[%s154 + $0x90] sm:$0xff] %v191
                %v193 = vld [vmem:[%s153 + $0x128] sm:$0xff]
                %194 = vst [vmem:[%s154 + $0x98] sm:$0xff] %v193
                %v195 = vld [vmem:[%s153 + $0x140] sm:$0xff]
                %196 = vst [vmem:[%s154 + $0xa0] sm:$0xff] %v195
                %v197 = vld [vmem:[%s153 + $0x148] sm:$0xff]
                %198 = vst [vmem:[%s154 + $0xa8] sm:$0xff] %v197
                %v199 = vld [vmem:[%s153 + $0x160] sm:$0xff]
                %200 = vst [vmem:[%s154 + $0xb0] sm:$0xff] %v199
                %v201 = vld [vmem:[%s153 + $0x168] sm:$0xff]
                %202 = vst [vmem:[%s154 + $0xb8] sm:$0xff] %v201
                %v203 = vld [vmem:[%s153 + $0x180] sm:$0xff]
                %204 = vst [vmem:[%s154 + $0xc0] sm:$0xff] %v203
                %v205 = vld [vmem:[%s153 + $0x188] sm:$0xff]
                %206 = vst [vmem:[%s154 + $0xc8] sm:$0xff] %v205
                %v207 = vld [vmem:[%s153 + $0x1a0] sm:$0xff]
                %208 = vst [vmem:[%s154 + $0xd0] sm:$0xff] %v207
                %v209 = vld [vmem:[%s153 + $0x1a8] sm:$0xff]
                %210 = vst [vmem:[%s154 + $0xd8] sm:$0xff] %v209
                %v211 = vld [vmem:[%s153 + $0x1c0] sm:$0xff]
                %212 = vst [vmem:[%s154 + $0xe0] sm:$0xff] %v211
                %v213 = vld [vmem:[%s153 + $0x1c8] sm:$0xff]
                %214 = vst [vmem:[%s154 + $0xe8] sm:$0xff] %v213
                %v215 = vld [vmem:[%s153 + $0x1e0] sm:$0xff]
                %216 = vst [vmem:[%s154 + $0xf0] sm:$0xff] %v215
                %v217 = vld [vmem:[%s153 + $0x1e8] sm:$0xff]
                %218 = vst [vmem:[%s154 + $0xf8] sm:$0xff] %v217
              $region37: #{video_text_forward.3} parent=31 // loop_footer
                %s152 = sadd.s32 1, %s148
              $region38: #{video_text_forward.3} parent=31 // loop_footer_branch
                %147 = sbr.rel target = $region34
              $region39: #{video_text_forward.3} parent=31 // loop_exit
                _
            $region32: #{video_text_forward.3} parent=27 // pred_fallthru
              _
            // Predicated region
            $region40: #{video_text_forward.3} parent=27 // pred_check
              _
            $region41: #{video_text_forward.3} parent=27 // pred_check_branch
              %220 = sbr.rel target = $region43
            $region42: #{video_text_forward.3} parent=27 // pred_region
              _
            $region43: #{video_text_forward.3} parent=27 // pred_fallthru
              _
          $region28: #{video_text_forward.3} parent=23 // pred_fallthru
            _
          %221 = vnop
        $region24: #{video_text_forward.3} parent=19 // pred_fallthru
          _
        // Predicated region
        $region44: #{video_text_forward.3} parent=19 // pred_check
          %p222 = pneg %p79
        $region45: #{video_text_forward.3} parent=19 // pred_check_branch
          %224 = sbr.rel (%p222) target = $region47
        $region46: #{video_text_forward.3} parent=19 // pred_region
          %s225 = smul.u32 4, %s12
          %p226 = scmp.lt.s32.totalorder %s225, 7
          %s227 = scalar_select %p226, %s225, 7
          %s228 = scalar_lea.vmem %s2, %s227
          %s229 = smul.u32 4, %s12
        $region47: #{video_text_forward.3} parent=19 // pred_fallthru
          _
      $region20: #{video_text_forward.3} parent=5 // pred_fallthru
        _
      %p230 = scmp.le.s32.totalorder 1, %s12
      %p231 = scmp.lt.s32.totalorder %s12, 3
      %p232 = pnand %p230, %p231
      %p233 = pneg %p232
      // Predicated region
      $region48: #{video_text_forward.3} parent=5 // pred_check
        _
      $region49: #{video_text_forward.3} parent=5 // pred_check_branch
        %235 = sbr.rel (%p232) target = $region51
      $region50: #{video_text_forward.3} parent=5 // pred_region
        %s236 = ssub.s32 %s12, 1
        %s237 = sand.u32 %s46, 1
        %s238 = sand.u32 %s46, 1
        %s239 = smul.addr %s238, 256
        %s240 = scalar_lea.vmem [#allocation2], %s239
        // Predicated region
        $region52: #{video_text_forward.3} parent=50 // pred_check
          %p241 = pneg %p59
        $region53: #{video_text_forward.3} parent=50 // pred_check_branch
          %243 = sbr.rel (%p241) target = $region55
        $region54: #{video_text_forward.3} parent=50 // pred_region
          _
        $region55: #{video_text_forward.3} parent=50 // pred_fallthru
          _
        %p244 = pneg %p33
        %p245 = pneg %p30
        %s246 = sand.u32 %s46, 1
        %s247 = sand.u32 %s46, 1
        %s248 = smul.addr %s247, 256
        %s249 = scalar_lea.vmem [#allocation2], %s248
        %p250 = pneg %p59
        %p251 = pneg %p56
        %s252 = smul.u32 4, %s17
        %p253 = scmp.lt.s32.totalorder %s252, 7
        %s254 = scalar_select %p253, %s252, 7
        %s255 = scalar_lea.vmem %s2, %s254
        %p256 = pneg %p85
        %p257 = pneg %p82
        %p258 = pneg %p111
        %p259 = pneg %p108
        %s260 = sand.u32 %s98, 1
        %s261 = scalar_lea.sflag [#allocation4], %s260
        %s262 = sand.u32 %s98, 1
        %s263 = smul.addr %s262, 64
        %s264 = scalar_lea.vmem [#allocation3], %s263
        %s265 = smul.u32 4, %s17
        %s266 = smul.u32 4, %s17
        %p267 = scmp.lt.s32.totalorder %s266, 7
        %s268 = scalar_select %p267, %s266, 7
        %s269 = scalar_lea.vmem %s2, %s268
        %s270 = smul.u32 4, %s17
        %s271 = smul.u32 4, %s17
        %v273 = vld [vmem:[%s0] sm:$0xf]
        %v274 = vld [vmem:[%s0 + $0x4] sm:$0xf]
        %v275 = vld [vmem:[%s240] sm:$0xff]
        %v276 = vld [vmem:[%s240 + $0x8] sm:$0xff]
        %v277 = vld [vmem:[%s240 + $0x10] sm:$0xff]
        %v278 = vld [vmem:[%s240 + $0x18] sm:$0xff]
        %v279 = vld [vmem:[%s240 + $0x20] sm:$0xff]
        %v280 = vld [vmem:[%s240 + $0x28] sm:$0xff]
        %v281 = vld [vmem:[%s240 + $0x30] sm:$0xff]
        %v282 = vld [vmem:[%s240 + $0x38] sm:$0xff]
        %v283 = vld [vmem:[%s240 + $0x40] sm:$0xff]
        %v284 = vld [vmem:[%s240 + $0x48] sm:$0xff]
        %v285 = vld [vmem:[%s240 + $0x50] sm:$0xff]
        %v286 = vld [vmem:[%s240 + $0x58] sm:$0xff]
        %v287 = vld [vmem:[%s240 + $0x60] sm:$0xff]
        %v288 = vld [vmem:[%s240 + $0x68] sm:$0xff]
        %v289 = vld [vmem:[%s240 + $0x70] sm:$0xff]
        %v290 = vld [vmem:[%s240 + $0x78] sm:$0xff]
        %v291 = vld [vmem:[%s240 + $0x80] sm:$0xff]
        %v292 = vld [vmem:[%s240 + $0x88] sm:$0xff]
        %v293 = vld [vmem:[%s240 + $0x90] sm:$0xff]
        %v294 = vld [vmem:[%s240 + $0x98] sm:$0xff]
        %v295 = vld [vmem:[%s240 + $0xa0] sm:$0xff]
        %v296 = vld [vmem:[%s240 + $0xa8] sm:$0xff]
        %v297 = vld [vmem:[%s240 + $0xb0] sm:$0xff]
        %v298 = vld [vmem:[%s240 + $0xb8] sm:$0xff]
        %v299 = vld [vmem:[%s240 + $0xc0] sm:$0xff]
        %v300 = vld [vmem:[%s240 + $0xc8] sm:$0xff]
        %v301 = vld [vmem:[%s240 + $0xd0] sm:$0xff]
        %v302 = vld [vmem:[%s240 + $0xd8] sm:$0xff]
        %v303 = vld [vmem:[%s240 + $0xe0] sm:$0xff]
        %v304 = vld [vmem:[%s240 + $0xe8] sm:$0xff]
        %v305 = vld [vmem:[%s240 + $0xf0] sm:$0xff]
        %v306 = vld [vmem:[%s240 + $0xf8] sm:$0xff]
        %v307 = vld [vmem:[%s269] sm:$0xf]
        %v309 = vlaneseq
        %v310 = vshrl.u32 %v309, 7
        %v311 = vsub.s32 0, %v310
        %v312 = vrot.slane %v307, %v311
        %v313 = vlaneseq
        %v314 = vshrl.u32 %v313, 7
        %v315 = vsub.s32 1, %v314
        %v316 = vrot.slane %v307, %v315
        %v317 = vlaneseq
        %v318 = vshrl.u32 %v317, 7
        %v319 = vsub.s32 2, %v318
        %v320 = vrot.slane %v307, %v319
        %v321 = vlaneseq
        %v322 = vshrl.u32 %v321, 7
        %v323 = vsub.s32 3, %v322
        %v324 = vrot.slane %v307, %v323
        %v331 = vunpack.c.l.b16 %v273
        %v332 = vunpack.c.l.b16 %v274
        %v333 = vpack.c.b16 %v332, %v331
        %v367 = vunpack.c.l.b16 %v275
        %v368 = vunpack.c.h.b16 %v275
        %v369 = vunpack.c.l.b16 %v276
        %v370 = vunpack.c.h.b16 %v276
        %v371 = vunpack.c.l.b16 %v277
        %v372 = vunpack.c.h.b16 %v277
        %v373 = vunpack.c.l.b16 %v278
        %v374 = vunpack.c.h.b16 %v278
        %v375 = vunpack.c.l.b16 %v279
        %v376 = vunpack.c.h.b16 %v279
        %v377 = vunpack.c.l.b16 %v280
        %v378 = vunpack.c.h.b16 %v280
        %v379 = vunpack.c.l.b16 %v281
        %v380 = vunpack.c.h.b16 %v281
        %v381 = vunpack.c.l.b16 %v282
        %v382 = vunpack.c.h.b16 %v282
        %v383 = vunpack.c.l.b16 %v283
        %v384 = vunpack.c.h.b16 %v283
        %v385 = vunpack.c.l.b16 %v284
        %v386 = vunpack.c.h.b16 %v284
        %v387 = vunpack.c.l.b16 %v285
        %v388 = vunpack.c.h.b16 %v285
        %v389 = vunpack.c.l.b16 %v286
        %v390 = vunpack.c.h.b16 %v286
        %v391 = vunpack.c.l.b16 %v287
        %v392 = vunpack.c.h.b16 %v287
        %v393 = vunpack.c.l.b16 %v288
        %v394 = vunpack.c.h.b16 %v288
        %v395 = vunpack.c.l.b16 %v289
        %v396 = vunpack.c.h.b16 %v289
        %v397 = vunpack.c.l.b16 %v290
        %v398 = vunpack.c.h.b16 %v290
        %v399 = vunpack.c.l.b16 %v291
        %v400 = vunpack.c.h.b16 %v291
        %v401 = vunpack.c.l.b16 %v292
        %v402 = vunpack.c.h.b16 %v292
        %v403 = vunpack.c.l.b16 %v293
        %v404 = vunpack.c.h.b16 %v293
        %v405 = vunpack.c.l.b16 %v294
        %v406 = vunpack.c.h.b16 %v294
        %v407 = vunpack.c.l.b16 %v295
        %v408 = vunpack.c.h.b16 %v295
        %v409 = vunpack.c.l.b16 %v296
        %v410 = vunpack.c.h.b16 %v296
        %v411 = vunpack.c.l.b16 %v297
        %v412 = vunpack.c.h.b16 %v297
        %v413 = vunpack.c.l.b16 %v298
        %v414 = vunpack.c.h.b16 %v298
        %v415 = vunpack.c.l.b16 %v299
        %v416 = vunpack.c.h.b16 %v299
        %v417 = vunpack.c.l.b16 %v300
        %v418 = vunpack.c.h.b16 %v300
        %v419 = vunpack.c.l.b16 %v301
        %v420 = vunpack.c.h.b16 %v301
        %v421 = vunpack.c.l.b16 %v302
        %v422 = vunpack.c.h.b16 %v302
        %v423 = vunpack.c.l.b16 %v303
        %v424 = vunpack.c.h.b16 %v303
        %v425 = vunpack.c.l.b16 %v304
        %v426 = vunpack.c.h.b16 %v304
        %v427 = vunpack.c.l.b16 %v305
        %v428 = vunpack.c.h.b16 %v305
        %v429 = vunpack.c.l.b16 %v306
        %v430 = vunpack.c.h.b16 %v306
        %v431 = vpack.c.b16 %v371, %v367
        %v432 = vpack.c.b16 %v372, %v368
        %v433 = vpack.c.b16 %v373, %v369
        %v434 = vpack.c.b16 %v374, %v370
        %v435 = vpack.c.b16 %v379, %v375
        %v436 = vpack.c.b16 %v380, %v376
        %v437 = vpack.c.b16 %v381, %v377
        %v438 = vpack.c.b16 %v382, %v378
        %v439 = vpack.c.b16 %v387, %v383
        %v440 = vpack.c.b16 %v388, %v384
        %v441 = vpack.c.b16 %v389, %v385
        %v442 = vpack.c.b16 %v390, %v386
        %v443 = vpack.c.b16 %v395, %v391
        %v444 = vpack.c.b16 %v396, %v392
        %v445 = vpack.c.b16 %v397, %v393
        %v446 = vpack.c.b16 %v398, %v394
        %v447 = vpack.c.b16 %v403, %v399
        %v448 = vpack.c.b16 %v404, %v400
        %v449 = vpack.c.b16 %v405, %v401
        %v450 = vpack.c.b16 %v406, %v402
        %v451 = vpack.c.b16 %v411, %v407
        %v452 = vpack.c.b16 %v412, %v408
        %v453 = vpack.c.b16 %v413, %v409
        %v454 = vpack.c.b16 %v414, %v410
        %v455 = vpack.c.b16 %v419, %v415
        %v456 = vpack.c.b16 %v420, %v416
        %v457 = vpack.c.b16 %v421, %v417
        %v458 = vpack.c.b16 %v422, %v418
        %v459 = vpack.c.b16 %v427, %v423
        %v460 = vpack.c.b16 %v428, %v424
        %v461 = vpack.c.b16 %v429, %v425
        %v462 = vpack.c.b16 %v430, %v426
        %495 = vmatprep.subr.bf16.mxu0 %v432
        %496 = vmatpush1.bf16.msra.mxu0 %v431
        %497 = vmatprep.subr.bf16.mxu0 %v436
        %498 = vmatpush1.bf16.msra.mxu0 %v435
        %499 = vmatprep.subr.bf16.mxu0 %v440
        %500 = vmatpush1.bf16.msra.mxu0 %v439
        %501 = vmatprep.subr.bf16.mxu0 %v444
        %502 = vmatpush1.bf16.msra.mxu0 %v443
        %503 = vmatprep.subr.bf16.mxu0 %v448
        %504 = vmatpush1.bf16.msra.mxu0 %v447
        %505 = vmatprep.subr.bf16.mxu0 %v452
        %506 = vmatpush1.bf16.msra.mxu0 %v451
        %507 = vmatprep.subr.bf16.mxu0 %v456
        %508 = vmatpush1.bf16.msra.mxu0 %v455
        %509 = vmatprep.subr.bf16.mxu0 %v460
        %510 = vmatpush1.bf16.msra.mxu0 %v459
        %511 = vmatprep.subr.bf16.mxu0 0
        %512 = vmatpush1.bf16.msra.mxu0 0
        %513 = vmatprep.subr.bf16.mxu0 0
        %514 = vmatpush1.bf16.msra.mxu0 0
        %515 = vmatprep.subr.bf16.mxu0 0
        %516 = vmatpush1.bf16.msra.mxu0 0
        %517 = vmatprep.subr.bf16.mxu0 0
        %518 = vmatpush1.bf16.msra.mxu0 0
        %519 = vmatprep.subr.bf16.mxu0 0
        %520 = vmatpush1.bf16.msra.mxu0 0
        %521 = vmatprep.subr.bf16.mxu0 0
        %522 = vmatpush1.bf16.msra.mxu0 0
        %523 = vmatprep.subr.bf16.mxu0 0
        %524 = vmatpush1.bf16.msra.mxu0 0
        %525 = vmatprep.subr.bf16.mxu0 0
        %526 = vmatpush1.bf16.msra.mxu0 0
        %527 = vmatprep.mubr.bf16.mxu0 0
        %528 = vmatmul.mubr.bf16.gmra.mrb[0].mxu0 %v333
        %v529 = vpop.f32.mrb[0].mxu0
        %v530 = vadd.f32 %v312, %v529
        %v531 = vpop.f32.mrb[0].mxu0
        %v532 = vadd.f32 %v316, %v531
        %v533 = vpop.f32.mrb[0].mxu0
        %v534 = vadd.f32 %v312, %v533
        %v535 = vpop.f32.mrb[0].mxu0
        %v536 = vadd.f32 %v316, %v535
        %537 = vdwg.mxu0
        %538 = vmatprep.subr.bf16.mxu0 %v434
        %539 = vmatpush1.bf16.msra.mxu0 %v433
        %540 = vmatprep.subr.bf16.mxu0 %v438
        %541 = vmatpush1.bf16.msra.mxu0 %v437
        %542 = vmatprep.subr.bf16.mxu0 %v442
        %543 = vmatpush1.bf16.msra.mxu0 %v441
        %544 = vmatprep.subr.bf16.mxu0 %v446
        %545 = vmatpush1.bf16.msra.mxu0 %v445
        %546 = vmatprep.subr.bf16.mxu0 %v450
        %547 = vmatpush1.bf16.msra.mxu0 %v449
        %548 = vmatprep.subr.bf16.mxu0 %v454
        %549 = vmatpush1.bf16.msra.mxu0 %v453
        %550 = vmatprep.subr.bf16.mxu0 %v458
        %551 = vmatpush1.bf16.msra.mxu0 %v457
        %552 = vmatprep.subr.bf16.mxu0 %v462
        %553 = vmatpush1.bf16.msra.mxu0 %v461
        %554 = vmatprep.subr.bf16.mxu0 0
        %555 = vmatpush1.bf16.msra.mxu0 0
        %556 = vmatprep.subr.bf16.mxu0 0
        %557 = vmatpush1.bf16.msra.mxu0 0
        %558 = vmatprep.subr.bf16.mxu0 0
        %559 = vmatpush1.bf16.msra.mxu0 0
        %560 = vmatprep.subr.bf16.mxu0 0
        %561 = vmatpush1.bf16.msra.mxu0 0
        %562 = vmatprep.subr.bf16.mxu0 0
        %563 = vmatpush1.bf16.msra.mxu0 0
        %564 = vmatprep.subr.bf16.mxu0 0
        %565 = vmatpush1.bf16.msra.mxu0 0
        %566 = vmatprep.subr.bf16.mxu0 0
        %567 = vmatpush1.bf16.msra.mxu0 0
        %568 = vmatprep.subr.bf16.mxu0 0
        %569 = vmatpush1.bf16.msra.mxu0 0
        %570 = vmatprep.mubr.bf16.mxu0 0
        %571 = vmatmul.mubr.bf16.gmra.mrb[0].mxu0 %v333
        %v572 = vpop.f32.mrb[0].mxu0
        %v573 = vadd.f32 %v320, %v572
        %v574 = vpop.f32.mrb[0].mxu0
        %v575 = vadd.f32 %v324, %v574
        %v576 = vpop.f32.mrb[0].mxu0
        %v577 = vadd.f32 %v320, %v576
        %v578 = vpop.f32.mrb[0].mxu0
        %v579 = vadd.f32 %v324, %v578
        %580 = vdwg.mxu0
        %581 = vst [vmem:[%s264] sm:$0xff] %v530
        %582 = vst [vmem:[%s264 + $0x8] sm:$0xff] %v532
        %583 = vst [vmem:[%s264 + $0x10] sm:$0xff] %v573
        %584 = vst [vmem:[%s264 + $0x18] sm:$0xff] %v575
        %585 = vst [vmem:[%s264 + $0x20] sm:$0xff] %v534
        %586 = vst [vmem:[%s264 + $0x28] sm:$0xff] %v536
        %587 = vst [vmem:[%s264 + $0x30] sm:$0xff] %v577
        %588 = vst [vmem:[%s264 + $0x38] sm:$0xff] %v579
        %s589 = sand.u32 %s98, 1
        %s590 = scalar_lea.sflag [#allocation4], %s589
        %s591 = sand.u32 %s98, 1
        %s592 = smul.addr %s591, 64
        %s593 = scalar_lea.vmem [#allocation3], %s592
        // Predicated region
        $region56: #{video_text_forward.3} parent=50 // pred_check
          %p594 = pneg %p108
        $region57: #{video_text_forward.3} parent=50 // pred_check_branch
          %596 = sbr.rel (%p594) target = $region59
        $region58: #{video_text_forward.3} parent=50 // pred_region
          %s597 = smul.u32 4, %s17
          %s599 = ssub.s32 1024, 1024
          %600 = vsyncadd %s590, %s599
          %s601 = smul.addr %s597, 128
          %s602 = scalar_lea.hbm %s3, %s601
          %s603 = sshll.u32 %s593, 4
          %s604 = int_to_ptr.vmem [resolvable:$true] %s603
          %609 = dma.vmem_to_hbm [thread:$0]  %s604, 1024, %s602, %s590, 512, 1024, 32
        $region59: #{video_text_forward.3} parent=50 // pred_fallthru
          _
      $region51: #{video_text_forward.3} parent=5 // pred_fallthru
        _
      %p610 = scmp.le.s32.totalorder 2, %s12
      // Predicated region
      $region60: #{video_text_forward.3} parent=5 // pred_check
        %p611 = pneg %p610
      $region61: #{video_text_forward.3} parent=5 // pred_check_branch
        %613 = sbr.rel (%p611) target = $region63
      $region62: #{video_text_forward.3} parent=5 // pred_region
        %s614 = ssub.s32 %s12, 2
        // Predicated region
        $region64: #{video_text_forward.3} parent=62 // pred_check
          %p615 = pneg %p114
        $region65: #{video_text_forward.3} parent=62 // pred_check_branch
          %617 = sbr.rel (%p615) target = $region67
        $region66: #{video_text_forward.3} parent=62 // pred_region
          %s618 = sand.u32 %s99, 1
          %s619 = scalar_lea.sflag [#allocation4], %s618
          %s620 = sand.u32 %s99, 1
          %s621 = smul.addr %s620, 64
          %s622 = scalar_lea.vmem [#allocation3], %s621
          %623 = dma.done %s619, 1024
        $region67: #{video_text_forward.3} parent=62 // pred_fallthru
          _
      $region63: #{video_text_forward.3} parent=5 // pred_fallthru
        _
    $region6: #{video_text_forward.3} parent=1 // loop_footer
      %s16 = sadd.s32 1, %s12
    $region7: #{video_text_forward.3} parent=1 // loop_footer_branch
      %11 = sbr.rel target = $region3
    $region8: #{video_text_forward.3} parent=1 // loop_exit
      _
    %624 = vsyncpa [#allocation4], 1
    %s625 = scalar_lea.sflag [#allocation4], 1
    %626 = vsyncpa %s625, 1

// kernel: video_text_forward.2
$region0: #{video_text_forward.2}
  #allocation0 [shape = 'u32[]', space=smem, size = 0x4, offset = 0x4, fixed_abs, tag = 'smem constant byte address 0x4 - core index']
  #allocation1 [shape = 'u32[144,128]{1,0:T(1,128)}', space=vmem, size = 0x12000, scoped, tag = 'internal scratch']
  %s0 = inlined_call_operand.vmem [shape: f32[2,256], index: 0, kind: input, shape index: {}]
  %s1 = inlined_call_operand.vmem [shape: f32[2,7,128], index: 1, kind: input, shape index: {}]
  %s2 = inlined_call_operand.hbm [shape: bf16[256,128], index: 2, kind: input, shape index: {}]
  %s3 = inlined_call_operand.hbm [shape: f32[1,128], index: 3, kind: input, shape index: {}]
  %s4 = inlined_call_operand.hbm [shape: f32[1,128], index: 4, kind: input, shape index: {}]
  %s5 = inlined_call_operand.hbm [shape: f32[1,128], index: 5, kind: input, shape index: {}]
  %s6 = inlined_call_operand.vmem [shape: bf16[128,384], index: 6, kind: input, shape index: {}]
  %s7 = inlined_call_operand.hbm [shape: f32[1,384], index: 7, kind: input, shape index: {}]
  %s8 = inlined_call_operand.hbm [shape: bf16[128,384], index: 8, kind: input, shape index: {}]
  %s9 = inlined_call_operand.hbm [shape: f32[1,128], index: 9, kind: input, shape index: {}]
  %s10 = inlined_call_operand.vmem [shape: bf16[16,128], index: 10, kind: output, shape index: {}]
  %s11 = sld [smem:[#allocation0]]
  $region78: #{video_text_forward.2} parent=0
    _
  %s13 = ssub.s32 1, %s11
  %s14 = scalar_select 0, %s13, %s11
  $region1: #{video_text_forward.2} parent=0
    #allocation2 [shape = 'u8[65536]{0}', space=vmem, size = 0x10000, scoped, tag = 'input window, operand 2, single buffered']
    #allocation3 [shape = 's32[1]{0}', space=sflag, size = 0x4, scoped, tag = 'scoped memory for video_text_forward.2']
    #allocation4 [shape = 'u8[512]{0}', space=vmem, size = 0x400, scoped, tag = 'input window, operand 3, single buffered']
    #allocation5 [shape = 's32[1]{0}', space=sflag, size = 0x4, scoped, tag = 'scoped memory for video_text_forward.2']
    #allocation6 [shape = 'u8[512]{0}', space=vmem, size = 0x400, scoped, tag = 'input window, operand 4, single buffered']
    #allocation7 [shape = 'u8[512]{0}', space=vmem, size = 0x400, scoped, tag = 'input window, operand 5, single buffered']
    #allocation8 [shape = 's32[1]{0}', space=sflag, size = 0x4, scoped, tag = 'scoped memory for video_text_forward.2']
    #allocation9 [shape = 'u8[1536]{0}', space=vmem, size = 0x800, scoped, tag = 'input window, operand 7, single buffered']
    #allocation10 [shape = 'u8[98304]{0}', space=vmem, size = 0x18000, scoped, tag = 'input window, operand 8, single buffered']
    #allocation11 [shape = 's32[1]{0}', space=sflag, size = 0x4, scoped, tag = 'scoped memory for video_text_forward.2']
    #allocation12 [shape = 'u8[512]{0}', space=vmem, size = 0x400, scoped, tag = 'input window, operand 9, single buffered']
    %15 = vsyncpa [#allocation3], 0
    %16 = vsyncpa [#allocation5], 0
    %17 = vsyncpa [#allocation8], 0
    %18 = vsyncpa [#allocation11], 0
    // Predicated region
    $region2: #{video_text_forward.2} parent=1 // pred_check
      _
    $region3: #{video_text_forward.2} parent=1 // pred_check_branch
      %20 = sbr.rel (0) target = $region5
    $region4: #{video_text_forward.2} parent=1 // pred_region
      _
    $region5: #{video_text_forward.2} parent=1 // pred_fallthru
      _
    // Predicated region
    $region6: #{video_text_forward.2} parent=1 // pred_check
      _
    $region7: #{video_text_forward.2} parent=1 // pred_check_branch
      %22 = sbr.rel (0) target = $region9
    $region8: #{video_text_forward.2} parent=1 // pred_region
      _
    $region9: #{video_text_forward.2} parent=1 // pred_fallthru
      _
    // Predicated region
    $region10: #{video_text_forward.2} parent=1 // pred_check
      _
    $region11: #{video_text_forward.2} parent=1 // pred_check_branch
      %24 = sbr.rel (0) target = $region13
    $region12: #{video_text_forward.2} parent=1 // pred_region
      %s26 = ssub.s32 2048, 2048
      %27 = vsyncadd [#allocation3], %s26
      %s28 = sshll.u32 [#allocation2], 4
      %s29 = int_to_ptr.vmem [resolvable:$true] %s28
      %34 = dma.hbm_to_vmem [thread:$0]  %s2, 2048, %s29, [#allocation3], 64, 64, 4
    $region13: #{video_text_forward.2} parent=1 // pred_fallthru
      _
    // Predicated region
    $region14: #{video_text_forward.2} parent=1 // pred_check
      _
    $region15: #{video_text_forward.2} parent=1 // pred_check_branch
      %36 = sbr.rel (0) target = $region17
    $region16: #{video_text_forward.2} parent=1 // pred_region
      %s38 = ssub.s32 16, 16
      %39 = vsyncadd [#allocation5], %s38
      %s41 = sshll.u32 [#allocation4], 4
      %s42 = int_to_ptr.vmem [resolvable:$true] %s41
      %44 = dma.hbm_to_vmem [thread:$0]  %s3, 16, %s42, [#allocation5]
    $region17: #{video_text_forward.2} parent=1 // pred_fallthru
      _
    // Predicated region
    $region18: #{video_text_forward.2} parent=1 // pred_check
      _
    $region19: #{video_text_forward.2} parent=1 // pred_check_branch
      %46 = sbr.rel (0) target = $region21
    $region20: #{video_text_forward.2} parent=1 // pred_region
      %s48 = ssub.s32 16, 16
      %49 = vsyncadd [#allocation5], %s48
      %s51 = sshll.u32 [#allocation6], 4
      %s52 = int_to_ptr.vmem [resolvable:$true] %s51
      %54 = dma.hbm_to_vmem [thread:$0]  %s4, 16, %s52, [#allocation5]
    $region21: #{video_text_forward.2} parent=1 // pred_fallthru
      _
    // Predicated region
    $region22: #{video_text_forward.2} parent=1 // pred_check
      _
    $region23: #{video_text_forward.2} parent=1 // pred_check_branch
      %56 = sbr.rel (0) target = $region25
    $region24: #{video_text_forward.2} parent=1 // pred_region
      %s58 = ssub.s32 16, 16
      %59 = vsyncadd [#allocation8], %s58
      %s61 = sshll.u32 [#allocation7], 4
      %s62 = int_to_ptr.vmem [resolvable:$true] %s61
      %64 = dma.hbm_to_vmem [thread:$0]  %s5, 16, %s62, [#allocation8]
    $region25: #{video_text_forward.2} parent=1 // pred_fallthru
      _
    // Predicated region
    $region26: #{video_text_forward.2} parent=1 // pred_check
      _
    $region27: #{video_text_forward.2} parent=1 // pred_check_branch
      %66 = sbr.rel (0) target = $region29
    $region28: #{video_text_forward.2} parent=1 // pred_region
      _
    $region29: #{video_text_forward.2} parent=1 // pred_fallthru
      _
    // Predicated region
    $region30: #{video_text_forward.2} parent=1 // pred_check
      _
    $region31: #{video_text_forward.2} parent=1 // pred_check_branch
      %68 = sbr.rel (0) target = $region33
    $region32: #{video_text_forward.2} parent=1 // pred_region
      %s70 = ssub.s32 48, 48
      %71 = vsyncadd [#allocation8], %s70
      %s73 = sshll.u32 [#allocation9], 4
      %s74 = int_to_ptr.vmem [resolvable:$true] %s73
      %76 = dma.hbm_to_vmem [thread:$0]  %s7, 48, %s74, [#allocation8]
    $region33: #{video_text_forward.2} parent=1 // pred_fallthru
      _
    // Predicated region
    $region34: #{video_text_forward.2} parent=1 // pred_check
      _
    $region35: #{video_text_forward.2} parent=1 // pred_check_branch
      %78 = sbr.rel (0) target = $region37
    $region36: #{video_text_forward.2} parent=1 // pred_region
      %s80 = ssub.s32 3072, 3072
      %81 = vsyncadd [#allocation11], %s80
      %s82 = sshll.u32 [#allocation10], 4
      %s83 = int_to_ptr.vmem [resolvable:$true] %s82
      %88 = dma.hbm_to_vmem [thread:$0]  %s8, 3072, %s83, [#allocation11], 192, 192, 12
    $region37: #{video_text_forward.2} parent=1 // pred_fallthru
      _
    // Predicated region
    $region38: #{video_text_forward.2} parent=1 // pred_check
      _
    $region39: #{video_text_forward.2} parent=1 // pred_check_branch
      %90 = sbr.rel (0) target = $region41
    $region40: #{video_text_forward.2} parent=1 // pred_region
      %s92 = ssub.s32 16, 16
      %93 = vsyncadd [#allocation11], %s92
      %s95 = sshll.u32 [#allocation12], 4
      %s96 = int_to_ptr.vmem [resolvable:$true] %s95
      %98 = dma.hbm_to_vmem [thread:$0]  %s9, 16, %s96, [#allocation11]
    $region41: #{video_text_forward.2} parent=1 // pred_fallthru
      _
    // Predicated region
    $region42: #{video_text_forward.2} parent=1 // pred_check
      _
    $region43: #{video_text_forward.2} parent=1 // pred_check_branch
      %100 = sbr.rel (0) target = $region45
    $region44: #{video_text_forward.2} parent=1 // pred_region
      %101 = dma.done [#allocation3], 2048
    $region45: #{video_text_forward.2} parent=1 // pred_fallthru
      _
    // Predicated region
    $region46: #{video_text_forward.2} parent=1 // pred_check
      _
    $region47: #{video_text_forward.2} parent=1 // pred_check_branch
      %103 = sbr.rel (0) target = $region49
    $region48: #{video_text_forward.2} parent=1 // pred_region
      %104 = dma.done [#allocation5], 16
    $region49: #{video_text_forward.2} parent=1 // pred_fallthru
      _
    // Predicated region
    $region50: #{video_text_forward.2} parent=1 // pred_check
      _
    $region51: #{video_text_forward.2} parent=1 // pred_check_branch
      %106 = sbr.rel (0) target = $region53
    $region52: #{video_text_forward.2} parent=1 // pred_region
      %107 = dma.done [#allocation5], 16
    $region53: #{video_text_forward.2} parent=1 // pred_fallthru
      _
    // Predicated region
    $region54: #{video_text_forward.2} parent=1 // pred_check
      _
    $region55: #{video_text_forward.2} parent=1 // pred_check_branch
      %109 = sbr.rel (0) target = $region57
    $region56: #{video_text_forward.2} parent=1 // pred_region
      %110 = dma.done [#allocation8], 16
    $region57: #{video_text_forward.2} parent=1 // pred_fallthru
      _
    // Predicated region
    $region58: #{video_text_forward.2} parent=1 // pred_check
      _
    $region59: #{video_text_forward.2} parent=1 // pred_check_branch
      %112 = sbr.rel (0) target = $region61
    $region60: #{video_text_forward.2} parent=1 // pred_region
      %113 = dma.done [#allocation8], 48
    $region61: #{video_text_forward.2} parent=1 // pred_fallthru
      _
    // Predicated region
    $region62: #{video_text_forward.2} parent=1 // pred_check
      _
    $region63: #{video_text_forward.2} parent=1 // pred_check_branch
      %115 = sbr.rel (0) target = $region65
    $region64: #{video_text_forward.2} parent=1 // pred_region
      %116 = dma.done [#allocation11], 3072
    $region65: #{video_text_forward.2} parent=1 // pred_fallthru
      _
    // Predicated region
    $region66: #{video_text_forward.2} parent=1 // pred_check
      _
    $region67: #{video_text_forward.2} parent=1 // pred_check_branch
      %118 = sbr.rel (0) target = $region69
    $region68: #{video_text_forward.2} parent=1 // pred_region
      %119 = dma.done [#allocation11], 16
    $region69: #{video_text_forward.2} parent=1 // pred_fallthru
      _
    %v121 = vld [vmem:[%s0] sm:$0xf]
    %v124 = vunpack.c.l.s4 1983009808
    %v125 = vunpack.c.0.s8 %v124
    %v126 = vlaneseq
    %v127 = vshrl.u32 %v126, 7
    %v128 = vsub.s32 %v125, %v127
    %v129 = vrot.slane %v121, %v128
    %v130 = vcombine.high %v129, %v129
    %v133 = vpack.c.bf16 %v129, %v129
    %v134 = vpack.c.bf16 %v130, %v130
    %v135 = vld [vmem:[#allocation2] sm:$0xf]
    %v136 = vld [vmem:[#allocation2 + $0x4] sm:$0xf]
    %v137 = vld [vmem:[#allocation2 + $0x8] sm:$0xf]
    %v138 = vld [vmem:[#allocation2 + $0xc] sm:$0xf]
    %v139 = vld [vmem:[#allocation2 + $0x10] sm:$0xf]
    %v140 = vld [vmem:[#allocation2 + $0x14] sm:$0xf]
    %v141 = vld [vmem:[#allocation2 + $0x18] sm:$0xf]
    %v142 = vld [vmem:[#allocation2 + $0x1c] sm:$0xf]
    %v143 = vld [vmem:[#allocation2 + $0x20] sm:$0xf]
    %v144 = vld [vmem:[#allocation2 + $0x24] sm:$0xf]
    %v145 = vld [vmem:[#allocation2 + $0x28] sm:$0xf]
    %v146 = vld [vmem:[#allocation2 + $0x2c] sm:$0xf]
    %v147 = vld [vmem:[#allocation2 + $0x30] sm:$0xf]
    %v148 = vld [vmem:[#allocation2 + $0x34] sm:$0xf]
    %v149 = vld [vmem:[#allocation2 + $0x38] sm:$0xf]
    %v150 = vld [vmem:[#allocation2 + $0x3c] sm:$0xf]
    %v151 = vld [vmem:[#allocation2 + $0x40] sm:$0xf]
    %v152 = vld [vmem:[#allocation2 + $0x44] sm:$0xf]
    %v153 = vld [vmem:[#allocation2 + $0x48] sm:$0xf]
    %v154 = vld [vmem:[#allocation2 + $0x4c] sm:$0xf]
    %v155 = vld [vmem:[#allocation2 + $0x50] sm:$0xf]
    %v156 = vld [vmem:[#allocation2 + $0x54] sm:$0xf]
    %v157 = vld [vmem:[#allocation2 + $0x58] sm:$0xf]
    %v158 = vld [vmem:[#allocation2 + $0x5c] sm:$0xf]
    %v159 = vld [vmem:[#allocation2 + $0x60] sm:$0xf]
    %v160 = vld [vmem:[#allocation2 + $0x64] sm:$0xf]
    %v161 = vld [vmem:[#allocation2 + $0x68] sm:$0xf]
    %v162 = vld [vmem:[#allocation2 + $0x6c] sm:$0xf]
    %v163 = vld [vmem:[#allocation2 + $0x70] sm:$0xf]
    %v164 = vld [vmem:[#allocation2 + $0x74] sm:$0xf]
    %v165 = vld [vmem:[#allocation2 + $0x78] sm:$0xf]
    %v166 = vld [vmem:[#allocation2 + $0x7c] sm:$0xf]
    %v167 = vld [vmem:[#allocation4] sm:$0x1]
    %v169 = vlaneseq
    %v170 = vshrl.u32 %v169, 7
    %v171 = vsub.s32 0, %v170
    %v172 = vrot.slane %v167, %v171
    %v206 = vunpack.c.l.b16 %v135
    %v207 = vunpack.c.l.b16 %v136
    %v208 = vunpack.c.l.b16 %v137
    %v209 = vunpack.c.l.b16 %v138
    %v210 = vunpack.c.l.b16 %v139
    %v211 = vunpack.c.l.b16 %v140
    %v212 = vunpack.c.l.b16 %v141
    %v213 = vunpack.c.l.b16 %v142
    %v214 = vunpack.c.l.b16 %v143
    %v215 = vunpack.c.l.b16 %v144
    %v216 = vunpack.c.l.b16 %v145
    %v217 = vunpack.c.l.b16 %v146
    %v218 = vunpack.c.l.b16 %v147
    %v219 = vunpack.c.l.b16 %v148
    %v220 = vunpack.c.l.b16 %v149
    %v221 = vunpack.c.l.b16 %v150
    %v222 = vunpack.c.l.b16 %v151
    %v223 = vunpack.c.l.b16 %v152
    %v224 = vunpack.c.l.b16 %v153
    %v225 = vunpack.c.l.b16 %v154
    %v226 = vunpack.c.l.b16 %v155
    %v227 = vunpack.c.l.b16 %v156
    %v228 = vunpack.c.l.b16 %v157
    %v229 = vunpack.c.l.b16 %v158
    %v230 = vunpack.c.l.b16 %v159
    %v231 = vunpack.c.l.b16 %v160
    %v232 = vunpack.c.l.b16 %v161
    %v233 = vunpack.c.l.b16 %v162
    %v234 = vunpack.c.l.b16 %v163
    %v235 = vunpack.c.l.b16 %v164
    %v236 = vunpack.c.l.b16 %v165
    %v237 = vunpack.c.l.b16 %v166
    %v238 = vpack.c.b16 %v207, %v206
    %v239 = vpack.c.b16 %v209, %v208
    %v240 = vpack.c.b16 %v211, %v210
    %v241 = vpack.c.b16 %v213, %v212
    %v242 = vpack.c.b16 %v215, %v214
    %v243 = vpack.c.b16 %v217, %v216
    %v244 = vpack.c.b16 %v219, %v218
    %v245 = vpack.c.b16 %v221, %v220
    %v246 = vpack.c.b16 %v223, %v222
    %v247 = vpack.c.b16 %v225, %v224
    %v248 = vpack.c.b16 %v227, %v226
    %v249 = vpack.c.b16 %v229, %v228
    %v250 = vpack.c.b16 %v231, %v230
    %v251 = vpack.c.b16 %v233, %v232
    %v252 = vpack.c.b16 %v235, %v234
    %v253 = vpack.c.b16 %v237, %v236
    %270 = vmatprep.subr.bf16.mxu0 0
    %271 = vmatpush1.bf16.msra.mxu0 %v238
    %272 = vmatprep.subr.bf16.mxu0 0
    %273 = vmatpush1.bf16.msra.mxu0 %v239
    %274 = vmatprep.subr.bf16.mxu0 0
    %275 = vmatpush1.bf16.msra.mxu0 %v240
    %276 = vmatprep.subr.bf16.mxu0 0
    %277 = vmatpush1.bf16.msra.mxu0 %v241
    %278 = vmatprep.subr.bf16.mxu0 0
    %279 = vmatpush1.bf16.msra.mxu0 %v242
    %280 = vmatprep.subr.bf16.mxu0 0
    %281 = vmatpush1.bf16.msra.mxu0 %v243
    %282 = vmatprep.subr.bf16.mxu0 0
    %283 = vmatpush1.bf16.msra.mxu0 %v244
    %284 = vmatprep.subr.bf16.mxu0 0
    %285 = vmatpush1.bf16.msra.mxu0 %v245
    %286 = vmatprep.subr.bf16.mxu0 0
    %287 = vmatpush1.bf16.msra.mxu0 %v246
    %288 = vmatprep.subr.bf16.mxu0 0
    %289 = vmatpush1.bf16.msra.mxu0 %v247
    %290 = vmatprep.subr.bf16.mxu0 0
    %291 = vmatpush1.bf16.msra.mxu0 %v248
    %292 = vmatprep.subr.bf16.mxu0 0
    %293 = vmatpush1.bf16.msra.mxu0 %v249
    %294 = vmatprep.subr.bf16.mxu0 0
    %295 = vmatpush1.bf16.msra.mxu0 %v250
    %296 = vmatprep.subr.bf16.mxu0 0
    %297 = vmatpush1.bf16.msra.mxu0 %v251
    %298 = vmatprep.subr.bf16.mxu0 0
    %299 = vmatpush1.bf16.msra.mxu0 %v252
    %300 = vmatprep.subr.bf16.mxu0 0
    %301 = vmatpush1.bf16.msra.mxu0 %v253
    %302 = vmatprep.mubr.bf16.mxu0 %v134
    %303 = vmatmul.mubr.bf16.gmra.mrb[0].mxu0 %v133
    %v304 = vpop.f32.mrb[0].mxu0
    %v305 = vadd.f32 %v172, %v304
    %v306 = vpop.f32.mrb[0].mxu0
    %v307 = vpop.f32.mrb[0].mxu0
    %v308 = vpop.f32.mrb[0].mxu0
    %309 = vdwg.mxu0
    %v310 = vld [vmem:[%s1] sm:$0x7f]
    %v311 = vld [vmem:[%s1 + $0x8] sm:$0x7f]
    %vm312 = vcmask 1046528
    %v313 = vsel %vm312, %v310, 0.0
    %314 = vadd.xlane.f32.xlu0 %v313
    %v315 = vpop.xlane.xlu0 %314
    %v316 = vsel %vm312, %v311, 0.0
    %317 = vadd.xlane.f32.xlu0 %v316
    %v318 = vpop.xlane.xlu0 %317
    %v319 = vrcp.pop 128.0
    %v320 = vmul.f32 %v315, %v319
    %v321 = vmul.f32 %v318, %v319
    %v322 = vsub.f32 %v310, %v320
    %v323 = vsub.f32 %v311, %v321
    %v324 = vmul.f32 %v322, %v322
    %v325 = vmul.f32 %v323, %v323
    %v326 = vsel %vm312, %v324, 0.0
    %327 = vadd.xlane.f32.xlu0 %v326
    %v328 = vpop.xlane.xlu0 %327
    %v329 = vsel %vm312, %v325, 0.0
    %330 = vadd.xlane.f32.xlu0 %v329
    %v331 = vpop.xlane.xlu0 %330
    %v332 = vmul.f32 %v328, %v319
    %v333 = vmul.f32 %v331, %v319
    %v334 = vadd.f32 %v332, 1e-12
    %v335 = vadd.f32 %v333, 1e-12
    %v336 = vrsqrt.pop %v334
    %v337 = vrsqrt.pop %v335
    %v338 = vmul.f32 %v322, %v336
    %v339 = vmul.f32 %v323, %v337
    %v340 = vld [vmem:[#allocation6] sm:$0x1]
    %v342 = vlaneseq
    %v343 = vshrl.u32 %v342, 7
    %v344 = vsub.s32 0, %v343
    %v345 = vrot.slane %v340, %v344
    %v347 = vmul.f32 %v338, %v345
    %v348 = vmul.f32 %v339, %v345
    %v349 = vld [vmem:[#allocation7] sm:$0x1]
    %v351 = vlaneseq
    %v352 = vshrl.u32 %v351, 7
    %v353 = vsub.s32 0, %v352
    %v354 = vrot.slane %v349, %v353
    %v356 = vadd.f32 %v347, %v354
    %v357 = vadd.f32 %v348, %v354
    %v360 = vunpack.c.l.s4 1966171168
    %v361 = vunpack.c.0.s8 %v360
    %v362 = vlaneseq
    %v363 = vshrl.u32 %v362, 7
    %v364 = vsub.s32 %v361, %v363
    %v365 = vrot.slane %v305, %v364
    %v366 = vcombine.high %v365, %v365
    %v368 = vunpack.c.l.s4 1966171168
    %v369 = vunpack.c.0.s8 %v368
    %v370 = vlaneseq
    %v371 = vshrl.u32 %v370, 7
    %v372 = vsub.s32 %v369, %v371
    %v373 = vrot.slane %v365, %v372
    %v375 = vunpack.c.l.s4 1966171168
    %v376 = vunpack.c.0.s8 %v375
    %v377 = vlaneseq
    %v378 = vshrl.u32 %v377, 7
    %v379 = vsub.s32 %v376, %v378
    %v380 = vrot.slane %v366, %v379
    %v385 = vrot.slane %v356, 7
    %v386 = vrot.slane %v357, 7
    %vm389 = vcmask 1040384
    %v390 = vsel %vm389, %v373, %v385
    %v391 = vsel %vm389, %v380, %v386
    %v392 = vpack.c.bf16 %v391, %v390
    %v393 = vld [vmem:[%s6] sm:$0xff]
    %v394 = vld [vmem:[%s6 + $0x8] sm:$0xf]
    %v395 = vld [vmem:[%s6 + $0xc] sm:$0xff]
    %v396 = vld [vmem:[%s6 + $0x14] sm:$0xf]
    %v397 = vld [vmem:[%s6 + $0x18] sm:$0xff]
    %v398 = vld [vmem:[%s6 + $0x20] sm:$0xf]
    %v399 = vld [vmem:[%s6 + $0x24] sm:$0xff]
    %v400 = vld [vmem:[%s6 + $0x2c] sm:$0xf]
    %v401 = vld [vmem:[%s6 + $0x30] sm:$0xff]
    %v402 = vld [vmem:[%s6 + $0x38] sm:$0xf]
    %v403 = vld [vmem:[%s6 + $0x3c] sm:$0xff]
    %v404 = vld [vmem:[%s6 + $0x44] sm:$0xf]
    %v405 = vld [vmem:[%s6 + $0x48] sm:$0xff]
    %v406 = vld [vmem:[%s6 + $0x50] sm:$0xf]
    %v407 = vld [vmem:[%s6 + $0x54] sm:$0xff]
    %v408 = vld [vmem:[%s6 + $0x5c] sm:$0xf]
    %v409 = vld [vmem:[%s6 + $0x60] sm:$0xff]
    %v410 = vld [vmem:[%s6 + $0x68] sm:$0xf]
    %v411 = vld [vmem:[%s6 + $0x6c] sm:$0xff]
    %v412 = vld [vmem:[%s6 + $0x74] sm:$0xf]
    %v413 = vld [vmem:[%s6 + $0x78] sm:$0xff]
    %v414 = vld [vmem:[%s6 + $0x80] sm:$0xf]
    %v415 = vld [vmem:[%s6 + $0x84] sm:$0xff]
    %v416 = vld [vmem:[%s6 + $0x8c] sm:$0xf]
    %v417 = vld [vmem:[%s6 + $0x90] sm:$0xff]
    %v418 = vld [vmem:[%s6 + $0x98] sm:$0xf]
    %v419 = vld [vmem:[%s6 + $0x9c] sm:$0xff]
    %v420 = vld [vmem:[%s6 + $0xa4] sm:$0xf]
    %v421 = vld [vmem:[%s6 + $0xa8] sm:$0xff]
    %v422 = vld [vmem:[%s6 + $0xb0] sm:$0xf]
    %v423 = vld [vmem:[%s6 + $0xb4] sm:$0xff]
    %v424 = vld [vmem:[%s6 + $0xbc] sm:$0xf]
    %v425 = vld [vmem:[#allocation9] sm:$0x7]
    %v427 = vlaneseq
    %v428 = vshrl.u32 %v427, 7
    %v429 = vsub.s32 0, %v428
    %v430 = vrot.slane %v425, %v429
    %v431 = vlaneseq
    %v432 = vshrl.u32 %v431, 7
    %v433 = vsub.s32 1, %v432
    %v434 = vrot.slane %v425, %v433
    %v435 = vlaneseq
    %v436 = vshrl.u32 %v435, 7
    %v437 = vsub.s32 2, %v436
    %v438 = vrot.slane %v425, %v437
    %v474 = vunpack.c.l.b16 %v393
    %v475 = vunpack.c.h.b16 %v393
    %v476 = vunpack.c.l.b16 %v394
    %v477 = vunpack.c.l.b16 %v395
    %v478 = vunpack.c.h.b16 %v395
    %v479 = vunpack.c.l.b16 %v396
    %v480 = vunpack.c.l.b16 %v397
    %v481 = vunpack.c.h.b16 %v397
    %v482 = vunpack.c.l.b16 %v398
    %v483 = vunpack.c.l.b16 %v399
    %v484 = vunpack.c.h.b16 %v399
    %v485 = vunpack.c.l.b16 %v400
    %v486 = vunpack.c.l.b16 %v401
    %v487 = vunpack.c.h.b16 %v401
    %v488 = vunpack.c.l.b16 %v402
    %v489 = vunpack.c.l.b16 %v403
    %v490 = vunpack.c.h.b16 %v403
    %v491 = vunpack.c.l.b16 %v404
    %v492 = vunpack.c.l.b16 %v405
    %v493 = vunpack.c.h.b16 %v405
    %v494 = vunpack.c.l.b16 %v406
    %v495 = vunpack.c.l.b16 %v407
    %v496 = vunpack.c.h.b16 %v407
    %v497 = vunpack.c.l.b16 %v408
    %v498 = vunpack.c.l.b16 %v409
    %v499 = vunpack.c.h.b16 %v409
    %v500 = vunpack.c.l.b16 %v410
    %v501 = vunpack.c.l.b16 %v411
    %v502 = vunpack.c.h.b16 %v411
    %v503 = vunpack.c.l.b16 %v412
    %v504 = vunpack.c.l.b16 %v413
    %v505 = vunpack.c.h.b16 %v413
    %v506 = vunpack.c.l.b16 %v414
    %v507 = vunpack.c.l.b16 %v415
    %v508 = vunpack.c.h.b16 %v415
    %v509 = vunpack.c.l.b16 %v416
    %v510 = vunpack.c.l.b16 %v417
    %v511 = vunpack.c.h.b16 %v417
    %v512 = vunpack.c.l.b16 %v418
    %v513 = vunpack.c.l.b16 %v419
    %v514 = vunpack.c.h.b16 %v419
    %v515 = vunpack.c.l.b16 %v420
    %v516 = vunpack.c.l.b16 %v421
    %v517 = vunpack.c.h.b16 %v421
    %v518 = vunpack.c.l.b16 %v422
    %v519 = vunpack.c.l.b16 %v423
    %v520 = vunpack.c.h.b16 %v423
    %v521 = vunpack.c.l.b16 %v424
    %v522 = vpack.c.b16 %v477, %v474
    %v523 = vpack.c.b16 %v478, %v475
    %v524 = vpack.c.b16 %v479, %v476
    %v525 = vpack.c.b16 %v483, %v480
    %v526 = vpack.c.b16 %v484, %v481
    %v527 = vpack.c.b16 %v485, %v482
    %v528 = vpack.c.b16 %v489, %v486
    %v529 = vpack.c.b16 %v490, %v487
    %v530 = vpack.c.b16 %v491, %v488
    %v531 = vpack.c.b16 %v495, %v492
    %v532 = vpack.c.b16 %v496, %v493
    %v533 = vpack.c.b16 %v497, %v494
    %v534 = vpack.c.b16 %v501, %v498
    %v535 = vpack.c.b16 %v502, %v499
    %v536 = vpack.c.b16 %v503, %v500
    %v537 = vpack.c.b16 %v507, %v504
    %v538 = vpack.c.b16 %v508, %v505
    %v539 = vpack.c.b16 %v509, %v506
    %v540 = vpack.c.b16 %v513, %v510
    %v541 = vpack.c.b16 %v514, %v511
    %v542 = vpack.c.b16 %v515, %v512
    %v543 = vpack.c.b16 %v519, %v516
    %v544 = vpack.c.b16 %v520, %v517
    %v545 = vpack.c.b16 %v521, %v518
    %570 = vmatprep.subr.bf16.mxu0 %v523
    %571 = vmatpush1.bf16.msra.mxu0 %v522
    %572 = vmatprep.subr.bf16.mxu0 %v526
    %573 = vmatpush1.bf16.msra.mxu0 %v525
    %574 = vmatprep.subr.bf16.mxu0 %v529
    %575 = vmatpush1.bf16.msra.mxu0 %v528
    %576 = vmatprep.subr.bf16.mxu0 %v532
    %577 = vmatpush1.bf16.msra.mxu0 %v531
    %578 = vmatprep.subr.bf16.mxu0 %v535
    %579 = vmatpush1.bf16.msra.mxu0 %v534
    %580 = vmatprep.subr.bf16.mxu0 %v538
    %581 = vmatpush1.bf16.msra.mxu0 %v537
    %582 = vmatprep.subr.bf16.mxu0 %v541
    %583 = vmatpush1.bf16.msra.mxu0 %v540
    %584 = vmatprep.subr.bf16.mxu0 %v544
    %585 = vmatpush1.bf16.msra.mxu0 %v543
    %586 = vmatprep.subr.bf16.mxu0 0
    %587 = vmatpush1.bf16.msra.mxu0 0
    %588 = vmatprep.subr.bf16.mxu0 0
    %589 = vmatpush1.bf16.msra.mxu0 0
    %590 = vmatprep.subr.bf16.mxu0 0
    %591 = vmatpush1.bf16.msra.mxu0 0
    %592 = vmatprep.subr.bf16.mxu0 0
    %593 = vmatpush1.bf16.msra.mxu0 0
    %594 = vmatprep.subr.bf16.mxu0 0
    %595 = vmatpush1.bf16.msra.mxu0 0
    %596 = vmatprep.subr.bf16.mxu0 0
    %597 = vmatpush1.bf16.msra.mxu0 0
    %598 = vmatprep.subr.bf16.mxu0 0
    %599 = vmatpush1.bf16.msra.mxu0 0
    %600 = vmatprep.subr.bf16.mxu0 0
    %601 = vmatpush1.bf16.msra.mxu0 0
    %602 = vmatprep.mubr.bf16.mxu0 0
    %603 = vmatmul.mubr.bf16.gmra.mrb[0].mxu0 %v392
    %v604 = vpop.f32.mrb[0].mxu0
    %v605 = vadd.f32 %v430, %v604
    %v606 = vpop.f32.mrb[0].mxu0
    %v607 = vadd.f32 %v434, %v606
    %v608 = vpop.f32.mrb[0].mxu0
    %v609 = vadd.f32 %v430, %v608
    %v610 = vpop.f32.mrb[0].mxu0
    %v611 = vadd.f32 %v434, %v610
    %612 = vdwg.mxu0
    %613 = vmatprep.subr.bf16.mxu0 0
    %614 = vmatpush1.bf16.msra.mxu0 %v524
    %615 = vmatprep.subr.bf16.mxu0 0
    %616 = vmatpush1.bf16.msra.mxu0 %v527
    %617 = vmatprep.subr.bf16.mxu0 0
    %618 = vmatpush1.bf16.msra.mxu0 %v530
    %619 = vmatprep.subr.bf16.mxu0 0
    %620 = vmatpush1.bf16.msra.mxu0 %v533
    %621 = vmatprep.subr.bf16.mxu0 0
    %622 = vmatpush1.bf16.msra.mxu0 %v536
    %623 = vmatprep.subr.bf16.mxu0 0
    %624 = vmatpush1.bf16.msra.mxu0 %v539
    %625 = vmatprep.subr.bf16.mxu0 0
    %626 = vmatpush1.bf16.msra.mxu0 %v542
    %627 = vmatprep.subr.bf16.mxu0 0
    %628 = vmatpush1.bf16.msra.mxu0 %v545
    %629 = vmatprep.subr.bf16.mxu0 0
    %630 = vmatpush1.bf16.msra.mxu0 0
    %631 = vmatprep.subr.bf16.mxu0 0
    %632 = vmatpush1.bf16.msra.mxu0 0
    %633 = vmatprep.subr.bf16.mxu0 0
    %634 = vmatpush1.bf16.msra.mxu0 0
    %635 = vmatprep.subr.bf16.mxu0 0
    %636 = vmatpush1.bf16.msra.mxu0 0
    %637 = vmatprep.subr.bf16.mxu0 0
    %638 = vmatpush1.bf16.msra.mxu0 0
    %639 = vmatprep.subr.bf16.mxu0 0
    %640 = vmatpush1.bf16.msra.mxu0 0
    %641 = vmatprep.subr.bf16.mxu0 0
    %642 = vmatpush1.bf16.msra.mxu0 0
    %643 = vmatprep.subr.bf16.mxu0 0
    %644 = vmatpush1.bf16.msra.mxu0 0
    %645 = vmatprep.mubr.bf16.mxu0 0
    %646 = vmatmul.mubr.bf16.gmra.mrb[0].mxu0 %v392
    %v647 = vpop.f32.mrb[0].mxu0
    %v648 = vadd.f32 %v438, %v647
    %v649 = vpop.f32.mrb[0].mxu0
    %v650 = vpop.f32.mrb[0].mxu0
    %v651 = vadd.f32 %v438, %v650
    %v652 = vpop.f32.mrb[0].mxu0
    %653 = vdwg.mxu0
    %v654 = vld [vmem:[#allocation10] sm:$0xff]
    %v655 = vld [vmem:[#allocation10 + $0x8] sm:$0xf]
    %v656 = vld [vmem:[#allocation10 + $0xc] sm:$0xff]
    %v657 = vld [vmem:[#allocation10 + $0x14] sm:$0xf]
    %v658 = vld [vmem:[#allocation10 + $0x18] sm:$0xff]
    %v659 = vld [vmem:[#allocation10 + $0x20] sm:$0xf]
    %v660 = vld [vmem:[#allocation10 + $0x24] sm:$0xff]
    %v661 = vld [vmem:[#allocation10 + $0x2c] sm:$0xf]
    %v662 = vld [vmem:[#allocation10 + $0x30] sm:$0xff]
    %v663 = vld [vmem:[#allocation10 + $0x38] sm:$0xf]
    %v664 = vld [vmem:[#allocation10 + $0x3c] sm:$0xff]
    %v665 = vld [vmem:[#allocation10 + $0x44] sm:$0xf]
    %v666 = vld [vmem:[#allocation10 + $0x48] sm:$0xff]
    %v667 = vld [vmem:[#allocation10 + $0x50] sm:$0xf]
    %v668 = vld [vmem:[#allocation10 + $0x54] sm:$0xff]
    %v669 = vld [vmem:[#allocation10 + $0x5c] sm:$0xf]
    %v670 = vld [vmem:[#allocation10 + $0x60] sm:$0xff]
    %v671 = vld [vmem:[#allocation10 + $0x68] sm:$0xf]
    %v672 = vld [vmem:[#allocation10 + $0x6c] sm:$0xff]
    %v673 = vld [vmem:[#allocation10 + $0x74] sm:$0xf]
    %v674 = vld [vmem:[#allocation10 + $0x78] sm:$0xff]
    %v675 = vld [vmem:[#allocation10 + $0x80] sm:$0xf]
    %v676 = vld [vmem:[#allocation10 + $0x84] sm:$0xff]
    %v677 = vld [vmem:[#allocation10 + $0x8c] sm:$0xf]
    %v678 = vld [vmem:[#allocation10 + $0x90] sm:$0xff]
    %v679 = vld [vmem:[#allocation10 + $0x98] sm:$0xf]
    %v680 = vld [vmem:[#allocation10 + $0x9c] sm:$0xff]
    %v681 = vld [vmem:[#allocation10 + $0xa4] sm:$0xf]
    %v682 = vld [vmem:[#allocation10 + $0xa8] sm:$0xff]
    %v683 = vld [vmem:[#allocation10 + $0xb0] sm:$0xf]
    %v684 = vld [vmem:[#allocation10 + $0xb4] sm:$0xff]
    %v685 = vld [vmem:[#allocation10 + $0xbc] sm:$0xf]
    %v686 = vld [vmem:[#allocation12] sm:$0x1]
    %v688 = vlaneseq
    %v689 = vshrl.u32 %v688, 7
    %v690 = vsub.s32 0, %v689
    %v691 = vrot.slane %v686, %v690
    %v725 = vunpack.c.l.b16 %v654
    %v726 = vunpack.c.h.b16 %v654
    %v727 = vunpack.c.l.b16 %v655
    %v728 = vunpack.c.l.b16 %v656
    %v729 = vunpack.c.h.b16 %v656
    %v730 = vunpack.c.l.b16 %v657
    %v731 = vunpack.c.l.b16 %v658
    %v732 = vunpack.c.h.b16 %v658
    %v733 = vunpack.c.l.b16 %v659
    %v734 = vunpack.c.l.b16 %v660
    %v735 = vunpack.c.h.b16 %v660
    %v736 = vunpack.c.l.b16 %v661
    %v737 = vunpack.c.l.b16 %v662
    %v738 = vunpack.c.h.b16 %v662
    %v739 = vunpack.c.l.b16 %v663
    %v740 = vunpack.c.l.b16 %v664
    %v741 = vunpack.c.h.b16 %v664
    %v742 = vunpack.c.l.b16 %v665
    %v743 = vunpack.c.l.b16 %v666
    %v744 = vunpack.c.h.b16 %v666
    %v745 = vunpack.c.l.b16 %v667
    %v746 = vunpack.c.l.b16 %v668
    %v747 = vunpack.c.h.b16 %v668
    %v748 = vunpack.c.l.b16 %v669
    %v749 = vunpack.c.l.b16 %v670
    %v750 = vunpack.c.h.b16 %v670
    %v751 = vunpack.c.l.b16 %v671
    %v752 = vunpack.c.l.b16 %v672
    %v753 = vunpack.c.h.b16 %v672
    %v754 = vunpack.c.l.b16 %v673
    %v755 = vunpack.c.l.b16 %v674
    %v756 = vunpack.c.h.b16 %v674
    %v757 = vunpack.c.l.b16 %v675
    %v758 = vunpack.c.l.b16 %v676
    %v759 = vunpack.c.h.b16 %v676
    %v760 = vunpack.c.l.b16 %v677
    %v761 = vunpack.c.l.b16 %v678
    %v762 = vunpack.c.h.b16 %v678
    %v763 = vunpack.c.l.b16 %v679
    %v764 = vunpack.c.l.b16 %v680
    %v765 = vunpack.c.h.b16 %v680
    %v766 = vunpack.c.l.b16 %v681
    %v767 = vunpack.c.l.b16 %v682
    %v768 = vunpack.c.h.b16 %v682
    %v769 = vunpack.c.l.b16 %v683
    %v770 = vunpack.c.l.b16 %v684
    %v771 = vunpack.c.h.b16 %v684
    %v772 = vunpack.c.l.b16 %v685
    %v773 = vpack.c.b16 %v728, %v725
    %v774 = vpack.c.b16 %v729, %v726
    %v775 = vpack.c.b16 %v730, %v727
    %v776 = vpack.c.b16 %v734, %v731
    %v777 = vpack.c.b16 %v735, %v732
    %v778 = vpack.c.b16 %v736, %v733
    %v779 = vpack.c.b16 %v740, %v737
    %v780 = vpack.c.b16 %v741, %v738
    %v781 = vpack.c.b16 %v742, %v739
    %v782 = vpack.c.b16 %v746, %v743
    %v783 = vpack.c.b16 %v747, %v744
    %v784 = vpack.c.b16 %v748, %v745
    %v785 = vpack.c.b16 %v752, %v749
    %v786 = vpack.c.b16 %v753, %v750
    %v787 = vpack.c.b16 %v754, %v751
    %v788 = vpack.c.b16 %v758, %v755
    %v789 = vpack.c.b16 %v759, %v756
    %v790 = vpack.c.b16 %v760, %v757
    %v791 = vpack.c.b16 %v764, %v761
    %v792 = vpack.c.b16 %v765, %v762
    %v793 = vpack.c.b16 %v766, %v763
    %v794 = vpack.c.b16 %v770, %v767
    %v795 = vpack.c.b16 %v771, %v768
    %v796 = vpack.c.b16 %v772, %v769
    %821 = vmatprep.subr.bf16.mxu0 %v774
    %822 = vmatpush1.bf16.msra.mxu0 %v773
    %823 = vmatprep.subr.bf16.mxu0 %v777
    %824 = vmatpush1.bf16.msra.mxu0 %v776
    %825 = vmatprep.subr.bf16.mxu0 %v780
    %826 = vmatpush1.bf16.msra.mxu0 %v779
    %827 = vmatprep.subr.bf16.mxu0 %v783
    %828 = vmatpush1.bf16.msra.mxu0 %v782
    %829 = vmatprep.subr.bf16.mxu0 %v786
    %830 = vmatpush1.bf16.msra.mxu0 %v785
    %831 = vmatprep.subr.bf16.mxu0 %v789
    %832 = vmatpush1.bf16.msra.mxu0 %v788
    %833 = vmatprep.subr.bf16.mxu0 %v792
    %834 = vmatpush1.bf16.msra.mxu0 %v791
    %835 = vmatprep.subr.bf16.mxu0 %v795
    %836 = vmatpush1.bf16.msra.mxu0 %v794
    %837 = vmatprep.subr.bf16.mxu0 0
    %838 = vmatpush1.bf16.msra.mxu0 0
    %839 = vmatprep.subr.bf16.mxu0 0
    %840 = vmatpush1.bf16.msra.mxu0 0
    %841 = vmatprep.subr.bf16.mxu0 0
    %842 = vmatpush1.bf16.msra.mxu0 0
    %843 = vmatprep.subr.bf16.mxu0 0
    %844 = vmatpush1.bf16.msra.mxu0 0
    %845 = vmatprep.subr.bf16.mxu0 0
    %846 = vmatpush1.bf16.msra.mxu0 0
    %847 = vmatprep.subr.bf16.mxu0 0
    %848 = vmatpush1.bf16.msra.mxu0 0
    %849 = vmatprep.subr.bf16.mxu0 0
    %850 = vmatpush1.bf16.msra.mxu0 0
    %851 = vmatprep.subr.bf16.mxu0 0
    %852 = vmatpush1.bf16.msra.mxu0 0
    %853 = vmatprep.mubr.bf16.mxu0 0
    %854 = vmatmul.mubr.bf16.gmra.mrb[0].mxu0 0
    %v855 = vpop.f32.mrb[0].mxu0
    %v856 = vadd.f32 0.0, %v855
    %v857 = vpop.f32.mrb[0].mxu0
    %v858 = vadd.f32 0.0, %v857
    %v859 = vpop.f32.mrb[0].mxu0
    %v860 = vpop.f32.mrb[0].mxu0
    %861 = vdwg.mxu0
    %862 = vmatprep.subr.bf16.mxu0 0
    %863 = vmatpush1.bf16.msra.mxu0 %v775
    %864 = vmatprep.subr.bf16.mxu0 0
    %865 = vmatpush1.bf16.msra.mxu0 %v778
    %866 = vmatprep.subr.bf16.mxu0 0
    %867 = vmatpush1.bf16.msra.mxu0 %v781
    %868 = vmatprep.subr.bf16.mxu0 0
    %869 = vmatpush1.bf16.msra.mxu0 %v784
    %870 = vmatprep.subr.bf16.mxu0 0
    %871 = vmatpush1.bf16.msra.mxu0 %v787
    %872 = vmatprep.subr.bf16.mxu0 0
    %873 = vmatpush1.bf16.msra.mxu0 %v790
    %874 = vmatprep.subr.bf16.mxu0 0
    %875 = vmatpush1.bf16.msra.mxu0 %v793
    %876 = vmatprep.subr.bf16.mxu0 0
    %877 = vmatpush1.bf16.msra.mxu0 %v796
    %878 = vmatprep.subr.bf16.mxu0 0
    %879 = vmatpush1.bf16.msra.mxu0 0
    %880 = vmatprep.subr.bf16.mxu0 0
    %881 = vmatpush1.bf16.msra.mxu0 0
    %882 = vmatprep.subr.bf16.mxu0 0
    %883 = vmatpush1.bf16.msra.mxu0 0
    %884 = vmatprep.subr.bf16.mxu0 0
    %885 = vmatpush1.bf16.msra.mxu0 0
    %886 = vmatprep.subr.bf16.mxu0 0
    %887 = vmatpush1.bf16.msra.mxu0 0
    %888 = vmatprep.subr.bf16.mxu0 0
    %889 = vmatpush1.bf16.msra.mxu0 0
    %890 = vmatprep.subr.bf16.mxu0 0
    %891 = vmatpush1.bf16.msra.mxu0 0
    %892 = vmatprep.subr.bf16.mxu0 0
    %893 = vmatpush1.bf16.msra.mxu0 0
    %894 = vmatprep.mubr.bf16.mxu0 0
    %895 = vmatmul.mubr.bf16.gmra.mrb[0].mxu0 0
    %v896 = vpop.f32.mrb[0].mxu0
    %v897 = vadd.f32 0.0, %v896
    %v898 = vpop.f32.mrb[0].mxu0
    %v899 = vpop.f32.mrb[0].mxu0
    %v900 = vpop.f32.mrb[0].mxu0
    %901 = vdwg.mxu0
    %v903 = vrot.slane %v856, 1
    %v906 = vadd.f32 %v605, %v856
    %v907 = vadd.f32 %v609, %v903
    %v908 = vxor.u32 %v906, 2147483648
    %v909 = vxor.u32 %v907, 2147483648
    %v910 = vmul.f32 %v908, 1.442695
    %v911 = vpow.pop %v910
    %v912 = vmul.f32 %v909, 1.442695
    %v913 = vpow.pop %v912
    %v914 = vadd.f32 %v911, 1.0
    %v915 = vadd.f32 %v913, 1.0
    %v916 = vrcp.pop %v914
    %v917 = vmul.f32 1.0, %v916
    %v918 = vrcp.pop %v915
    %v919 = vmul.f32 1.0, %v918
    %v921 = vrot.slane %v858, 1
    %v924 = vadd.f32 %v607, %v858
    %v925 = vadd.f32 %v611, %v921
    %v926 = vxor.u32 %v924, 2147483648
    %v927 = vxor.u32 %v925, 2147483648
    %v928 = vmul.f32 %v926, 1.442695
    %v929 = vpow.pop %v928
    %v930 = vmul.f32 %v927, 1.442695
    %v931 = vpow.pop %v930
    %v932 = vadd.f32 %v929, 1.0
    %v933 = vadd.f32 %v931, 1.0
    %v934 = vrcp.pop %v932
    %v935 = vmul.f32 1.0, %v934
    %v936 = vrcp.pop %v933
    %v937 = vmul.f32 1.0, %v936
    %v938 = vadd.f32 %v897, %v691
    %v940 = vrot.slane %v938, 1
    %v943 = vmul.f32 %v917, %v938
    %v944 = vmul.f32 %v919, %v940
    %v945 = vadd.f32 %v648, %v943
    %v946 = vadd.f32 %v651, %v944
    %v947 = vtanh.pop %v945
    %v948 = vtanh.pop %v946
    %v949 = vsub.f32 1.0, %v935
    %v950 = vsub.f32 1.0, %v937
    %v951 = vmul.f32 %v949, %v947
    %v952 = vmul.f32 %v950, %v948
    %v953 = vmul.f32 %v935, 0.0
    %v954 = vmul.f32 %v937, 0.0
    %v955 = vadd.f32 %v951, %v953
    %v956 = vadd.f32 %v952, %v954
    %v957 = vpack.c.bf16 %v955, %v955
    %v958 = vpack.c.bf16 %v956, %v956
    %v961 = vunpack.c.l.b16 %v957
    %v962 = vunpack.c.l.b16 %v958
    %v963 = vrot.slane %v962, 7
    %vm964 = vcmask 1041409
    %v965 = vsel %vm964, %v963, %v961
    %v966 = vpack.c.b16 %v965, %v965
    %968 = vmatprep.subr.bf16.mxu0 %v774
    %969 = vmatpush1.bf16.msra.mxu0 %v773
    %970 = vmatprep.subr.bf16.mxu0 %v777
    %971 = vmatpush1.bf16.msra.mxu0 %v776
    %972 = vmatprep.subr.bf16.mxu0 %v780
    %973 = vmatpush1.bf16.msra.mxu0 %v779
    %974 = vmatprep.subr.bf16.mxu0 %v783
    %975 = vmatpush1.bf16.msra.mxu0 %v782
    %976 = vmatprep.subr.bf16.mxu0 %v786
    %977 = vmatpush1.bf16.msra.mxu0 %v785
    %978 = vmatprep.subr.bf16.mxu0 %v789
    %979 = vmatpush1.bf16.msra.mxu0 %v788
    %980 = vmatprep.subr.bf16.mxu0 %v792
    %981 = vmatpush1.bf16.msra.mxu0 %v791
    %982 = vmatprep.subr.bf16.mxu0 %v795
    %983 = vmatpush1.bf16.msra.mxu0 %v794
    %984 = vmatprep.subr.bf16.mxu0 0
    %985 = vmatpush1.bf16.msra.mxu0 0
    %986 = vmatprep.subr.bf16.mxu0 0
    %987 = vmatpush1.bf16.msra.mxu0 0
    %988 = vmatprep.subr.bf16.mxu0 0
    %989 = vmatpush1.bf16.msra.mxu0 0
    %990 = vmatprep.subr.bf16.mxu0 0
    %991 = vmatpush1.bf16.msra.mxu0 0
    %992 = vmatprep.subr.bf16.mxu0 0
    %993 = vmatpush1.bf16.msra.mxu0 0
    %994 = vmatprep.subr.bf16.mxu0 0
    %995 = vmatpush1.bf16.msra.mxu0 0
    %996 = vmatprep.subr.bf16.mxu0 0
    %997 = vmatpush1.bf16.msra.mxu0 0
    %998 = vmatprep.subr.bf16.mxu0 0
    %999 = vmatpush1.bf16.msra.mxu0 0
    %1000 = vmatprep.mubr.bf16.mxu0 0
    %1001 = vmatmul.mubr.bf16.gmra.mrb[0].mxu0 %v966
    %v1002 = vpop.f32.mrb[0].mxu0
    %v1003 = vadd.f32 0.0, %v1002
    %v1004 = vpop.f32.mrb[0].mxu0
    %v1005 = vadd.f32 0.0, %v1004
    %v1006 = vpop.f32.mrb[0].mxu0
    %v1007 = vpop.f32.mrb[0].mxu0
    %1008 = vdwg.mxu0
    %1009 = vmatprep.subr.bf16.mxu0 0
    %1010 = vmatpush1.bf16.msra.mxu0 %v775
    %1011 = vmatprep.subr.bf16.mxu0 0
    %1012 = vmatpush1.bf16.msra.mxu0 %v778
    %1013 = vmatprep.subr.bf16.mxu0 0
    %1014 = vmatpush1.bf16.msra.mxu0 %v781
    %1015 = vmatprep.subr.bf16.mxu0 0
    %1016 = vmatpush1.bf16.msra.mxu0 %v784
    %1017 = vmatprep.subr.bf16.mxu0 0
    %1018 = vmatpush1.bf16.msra.mxu0 %v787
    %1019 = vmatprep.subr.bf16.mxu0 0
    %1020 = vmatpush1.bf16.msra.mxu0 %v790
    %1021 = vmatprep.subr.bf16.mxu0 0
    %1022 = vmatpush1.bf16.msra.mxu0 %v793
    %1023 = vmatprep.subr.bf16.mxu0 0
    %1024 = vmatpush1.bf16.msra.mxu0 %v796
    %1025 = vmatprep.subr.bf16.mxu0 0
    %1026 = vmatpush1.bf16.msra.mxu0 0
    %1027 = vmatprep.subr.bf16.mxu0 0
    %1028 = vmatpush1.bf16.msra.mxu0 0
    %1029 = vmatprep.subr.bf16.mxu0 0
    %1030 = vmatpush1.bf16.msra.mxu0 0
    %1031 = vmatprep.subr.bf16.mxu0 0
    %1032 = vmatpush1.bf16.msra.mxu0 0
    %1033 = vmatprep.subr.bf16.mxu0 0
    %1034 = vmatpush1.bf16.msra.mxu0 0
    %1035 = vmatprep.subr.bf16.mxu0 0
    %1036 = vmatpush1.bf16.msra.mxu0 0
    %1037 = vmatprep.subr.bf16.mxu0 0
    %1038 = vmatpush1.bf16.msra.mxu0 0
    %1039 = vmatprep.subr.bf16.mxu0 0
    %1040 = vmatpush1.bf16.msra.mxu0 0
    %1041 = vmatprep.mubr.bf16.mxu0 0
    %1042 = vmatmul.mubr.bf16.gmra.mrb[0].mxu0 %v966
    %v1043 = vpop.f32.mrb[0].mxu0
    %v1044 = vadd.f32 0.0, %v1043
    %v1045 = vpop.f32.mrb[0].mxu0
    %v1046 = vpop.f32.mrb[0].mxu0
    %v1047 = vpop.f32.mrb[0].mxu0
    %1048 = vdwg.mxu0
    %v1050 = vrot.slane %v1003, 7
    %v1053 = vadd.f32 %v605, %v1050
    %v1054 = vadd.f32 %v609, %v1003
    %v1055 = vxor.u32 %v1053, 2147483648
    %v1056 = vxor.u32 %v1054, 2147483648
    %v1057 = vmul.f32 %v1055, 1.442695
    %v1058 = vpow.pop %v1057
    %v1059 = vmul.f32 %v1056, 1.442695
    %v1060 = vpow.pop %v1059
    %v1061 = vadd.f32 %v1058, 1.0
    %v1062 = vadd.f32 %v1060, 1.0
    %v1063 = vrcp.pop %v1061
    %v1064 = vmul.f32 1.0, %v1063
    %v1065 = vrcp.pop %v1062
    %v1066 = vmul.f32 1.0, %v1065
    %v1068 = vrot.slane %v1005, 7
    %v1071 = vadd.f32 %v607, %v1068
    %v1072 = vadd.f32 %v611, %v1005
    %v1073 = vxor.u32 %v1071, 2147483648
    %v1074 = vxor.u32 %v1072, 2147483648
    %v1075 = vmul.f32 %v1073, 1.442695
    %v1076 = vpow.pop %v1075
    %v1077 = vmul.f32 %v1074, 1.442695
    %v1078 = vpow.pop %v1077
    %v1079 = vadd.f32 %v1076, 1.0
    %v1080 = vadd.f32 %v1078, 1.0
    %v1081 = vrcp.pop %v1079
    %v1082 = vmul.f32 1.0, %v1081
    %v1083 = vrcp.pop %v1080
    %v1084 = vmul.f32 1.0, %v1083
    %v1085 = vadd.f32 %v1044, %v691
    %v1087 = vrot.slane %v1085, 7
    %v1090 = vmul.f32 %v1064, %v1087
    %v1091 = vmul.f32 %v1066, %v1085
    %v1092 = vadd.f32 %v648, %v1090
    %v1093 = vadd.f32 %v651, %v1091
    %v1094 = vtanh.pop %v1092
    %v1095 = vtanh.pop %v1093
    %v1096 = vsub.f32 1.0, %v1082
    %v1097 = vsub.f32 1.0, %v1084
    %v1098 = vmul.f32 %v1096, %v1094
    %v1099 = vmul.f32 %v1097, %v1095
    %v1102 = vrot.slane %v955, 7
    %v1103 = vrot.slane %v956, 7
    %v1106 = vmul.f32 %v1082, %v1102
    %v1107 = vmul.f32 %v1084, %v1103
    %v1108 = vadd.f32 %v1098, %v1106
    %v1109 = vadd.f32 %v1099, %v1107
    %v1110 = vpack.c.bf16 %v1108, %v1108
    %v1111 = vpack.c.bf16 %v1109, %v1109
    %v1114 = vunpack.c.l.b16 %v1110
    %v1115 = vunpack.c.l.b16 %v1111
    %v1116 = vrot.slane %v1114, 1
    %v1117 = vsel %vm964, %v1115, %v1116
    %v1118 = vpack.c.b16 %v1117, %v1117
    %1120 = vmatprep.subr.bf16.mxu0 %v774
    %1121 = vmatpush1.bf16.msra.mxu0 %v773
    %1122 = vmatprep.subr.bf16.mxu0 %v777
    %1123 = vmatpush1.bf16.msra.mxu0 %v776
    %1124 = vmatprep.subr.bf16.mxu0 %v780
    %1125 = vmatpush1.bf16.msra.mxu0 %v779
    %1126 = vmatprep.subr.bf16.mxu0 %v783
    %1127 = vmatpush1.bf16.msra.mxu0 %v782
    %1128 = vmatprep.subr.bf16.mxu0 %v786
    %1129 = vmatpush1.bf16.msra.mxu0 %v785
    %1130 = vmatprep.subr.bf16.mxu0 %v789
    %1131 = vmatpush1.bf16.msra.mxu0 %v788
    %1132 = vmatprep.subr.bf16.mxu0 %v792
    %1133 = vmatpush1.bf16.msra.mxu0 %v791
    %1134 = vmatprep.subr.bf16.mxu0 %v795
    %1135 = vmatpush1.bf16.msra.mxu0 %v794
    %1136 = vmatprep.subr.bf16.mxu0 0
    %1137 = vmatpush1.bf16.msra.mxu0 0
    %1138 = vmatprep.subr.bf16.mxu0 0
    %1139 = vmatpush1.bf16.msra.mxu0 0
    %1140 = vmatprep.subr.bf16.mxu0 0
    %1141 = vmatpush1.bf16.msra.mxu0 0
    %1142 = vmatprep.subr.bf16.mxu0 0
    %1143 = vmatpush1.bf16.msra.mxu0 0
    %1144 = vmatprep.subr.bf16.mxu0 0
    %1145 = vmatpush1.bf16.msra.mxu0 0
    %1146 = vmatprep.subr.bf16.mxu0 0
    %1147 = vmatpush1.bf16.msra.mxu0 0
    %1148 = vmatprep.subr.bf16.mxu0 0
    %1149 = vmatpush1.bf16.msra.mxu0 0
    %1150 = vmatprep.subr.bf16.mxu0 0
    %1151 = vmatpush1.bf16.msra.mxu0 0
    %1152 = vmatprep.mubr.bf16.mxu0 0
    %1153 = vmatmul.mubr.bf16.gmra.mrb[0].mxu0 %v1118
    %v1154 = vpop.f32.mrb[0].mxu0
    %v1155 = vadd.f32 0.0, %v1154
    %v1156 = vpop.f32.mrb[0].mxu0
    %v1157 = vadd.f32 0.0, %v1156
    %v1158 = vpop.f32.mrb[0].mxu0
    %v1159 = vpop.f32.mrb[0].mxu0
    %1160 = vdwg.mxu0
    %1161 = vmatprep.subr.bf16.mxu0 0
    %1162 = vmatpush1.bf16.msra.mxu0 %v775
    %1163 = vmatprep.subr.bf16.mxu0 0
    %1164 = vmatpush1.bf16.msra.mxu0 %v778
    %1165 = vmatprep.subr.bf16.mxu0 0
    %1166 = vmatpush1.bf16.msra.mxu0 %v781
    %1167 = vmatprep.subr.bf16.mxu0 0
    %1168 = vmatpush1.bf16.msra.mxu0 %v784
    %1169 = vmatprep.subr.bf16.mxu0 0
    %1170 = vmatpush1.bf16.msra.mxu0 %v787
    %1171 = vmatprep.subr.bf16.mxu0 0
    %1172 = vmatpush1.bf16.msra.mxu0 %v790
    %1173 = vmatprep.subr.bf16.mxu0 0
    %1174 = vmatpush1.bf16.msra.mxu0 %v793
    %1175 = vmatprep.subr.bf16.mxu0 0
    %1176 = vmatpush1.bf16.msra.mxu0 %v796
    %1177 = vmatprep.subr.bf16.mxu0 0
    %1178 = vmatpush1.bf16.msra.mxu0 0
    %1179 = vmatprep.subr.bf16.mxu0 0
    %1180 = vmatpush1.bf16.msra.mxu0 0
    %1181 = vmatprep.subr.bf16.mxu0 0
    %1182 = vmatpush1.bf16.msra.mxu0 0
    %1183 = vmatprep.subr.bf16.mxu0 0
    %1184 = vmatpush1.bf16.msra.mxu0 0
    %1185 = vmatprep.subr.bf16.mxu0 0
    %1186 = vmatpush1.bf16.msra.mxu0 0
    %1187 = vmatprep.subr.bf16.mxu0 0
    %1188 = vmatpush1.bf16.msra.mxu0 0
    %1189 = vmatprep.subr.bf16.mxu0 0
    %1190 = vmatpush1.bf16.msra.mxu0 0
    %1191 = vmatprep.subr.bf16.mxu0 0
    %1192 = vmatpush1.bf16.msra.mxu0 0
    %1193 = vmatprep.mubr.bf16.mxu0 0
    %1194 = vmatmul.mubr.bf16.gmra.mrb[0].mxu0 %v1118
    %v1195 = vpop.f32.mrb[0].mxu0
    %v1196 = vadd.f32 0.0, %v1195
    %v1197 = vpop.f32.mrb[0].mxu0
    %v1198 = vpop.f32.mrb[0].mxu0
    %v1199 = vpop.f32.mrb[0].mxu0
    %1200 = vdwg.mxu0
    %v1202 = vrot.slane %v1155, 6
    %v1203 = vrot.slane %v1155, 7
    %v1206 = vadd.f32 %v605, %v1202
    %v1207 = vadd.f32 %v609, %v1203
    %v1208 = vxor.u32 %v1206, 2147483648
    %v1209 = vxor.u32 %v1207, 2147483648
    %v1210 = vmul.f32 %v1208, 1.442695
    %v1211 = vpow.pop %v1210
    %v1212 = vmul.f32 %v1209, 1.442695
    %v1213 = vpow.pop %v1212
    %v1214 = vadd.f32 %v1211, 1.0
    %v1215 = vadd.f32 %v1213, 1.0
    %v1216 = vrcp.pop %v1214
    %v1217 = vmul.f32 1.0, %v1216
    %v1218 = vrcp.pop %v1215
    %v1219 = vmul.f32 1.0, %v1218
    %v1221 = vrot.slane %v1157, 6
    %v1222 = vrot.slane %v1157, 7
    %v1225 = vadd.f32 %v607, %v1221
    %v1226 = vadd.f32 %v611, %v1222
    %v1227 = vxor.u32 %v1225, 2147483648
    %v1228 = vxor.u32 %v1226, 2147483648
    %v1229 = vmul.f32 %v1227, 1.442695
    %v1230 = vpow.pop %v1229
    %v1231 = vmul.f32 %v1228, 1.442695
    %v1232 = vpow.pop %v1231
    %v1233 = vadd.f32 %v1230, 1.0
    %v1234 = vadd.f32 %v1232, 1.0
    %v1235 = vrcp.pop %v1233
    %v1236 = vmul.f32 1.0, %v1235
    %v1237 = vrcp.pop %v1234
    %v1238 = vmul.f32 1.0, %v1237
    %v1239 = vadd.f32 %v1196, %v691
    %v1241 = vrot.slane %v1239, 6
    %v1242 = vrot.slane %v1239, 7
    %v1245 = vmul.f32 %v1217, %v1241
    %v1246 = vmul.f32 %v1219, %v1242
    %v1247 = vadd.f32 %v648, %v1245
    %v1248 = vadd.f32 %v651, %v1246
    %v1249 = vtanh.pop %v1247
    %v1250 = vtanh.pop %v1248
    %v1251 = vsub.f32 1.0, %v1236
    %v1252 = vsub.f32 1.0, %v1238
    %v1253 = vmul.f32 %v1251, %v1249
    %v1254 = vmul.f32 %v1252, %v1250
    %v1257 = vrot.slane %v1108, 7
    %v1258 = vrot.slane %v1109, 7
    %v1261 = vmul.f32 %v1236, %v1257
    %v1262 = vmul.f32 %v1238, %v1258
    %v1263 = vadd.f32 %v1253, %v1261
    %v1264 = vadd.f32 %v1254, %v1262
    %v1265 = vpack.c.bf16 %v1263, %v1263
    %v1266 = vpack.c.bf16 %v1264, %v1264
    %v1269 = vunpack.c.l.b16 %v1265
    %v1270 = vunpack.c.l.b16 %v1266
    %v1271 = vrot.slane %v1269, 2
    %v1272 = vrot.slane %v1270, 1
    %v1273 = vsel %vm964, %v1272, %v1271
    %v1274 = vpack.c.b16 %v1273, %v1273
    %1276 = vmatprep.subr.bf16.mxu0 %v774
    %1277 = vmatpush1.bf16.msra.mxu0 %v773
    %1278 = vmatprep.subr.bf16.mxu0 %v777
    %1279 = vmatpush1.bf16.msra.mxu0 %v776
    %1280 = vmatprep.subr.bf16.mxu0 %v780
    %1281 = vmatpush1.bf16.msra.mxu0 %v779
    %1282 = vmatprep.subr.bf16.mxu0 %v783
    %1283 = vmatpush1.bf16.msra.mxu0 %v782
    %1284 = vmatprep.subr.bf16.mxu0 %v786
    %1285 = vmatpush1.bf16.msra.mxu0 %v785
    %1286 = vmatprep.subr.bf16.mxu0 %v789
    %1287 = vmatpush1.bf16.msra.mxu0 %v788
    %1288 = vmatprep.subr.bf16.mxu0 %v792
    %1289 = vmatpush1.bf16.msra.mxu0 %v791
    %1290 = vmatprep.subr.bf16.mxu0 %v795
    %1291 = vmatpush1.bf16.msra.mxu0 %v794
    %1292 = vmatprep.subr.bf16.mxu0 0
    %1293 = vmatpush1.bf16.msra.mxu0 0
    %1294 = vmatprep.subr.bf16.mxu0 0
    %1295 = vmatpush1.bf16.msra.mxu0 0
    %1296 = vmatprep.subr.bf16.mxu0 0
    %1297 = vmatpush1.bf16.msra.mxu0 0
    %1298 = vmatprep.subr.bf16.mxu0 0
    %1299 = vmatpush1.bf16.msra.mxu0 0
    %1300 = vmatprep.subr.bf16.mxu0 0
    %1301 = vmatpush1.bf16.msra.mxu0 0
    %1302 = vmatprep.subr.bf16.mxu0 0
    %1303 = vmatpush1.bf16.msra.mxu0 0
    %1304 = vmatprep.subr.bf16.mxu0 0
    %1305 = vmatpush1.bf16.msra.mxu0 0
    %1306 = vmatprep.subr.bf16.mxu0 0
    %1307 = vmatpush1.bf16.msra.mxu0 0
    %1308 = vmatprep.mubr.bf16.mxu0 0
    %1309 = vmatmul.mubr.bf16.gmra.mrb[0].mxu0 %v1274
    %v1310 = vpop.f32.mrb[0].mxu0
    %v1311 = vadd.f32 0.0, %v1310
    %v1312 = vpop.f32.mrb[0].mxu0
    %v1313 = vadd.f32 0.0, %v1312
    %v1314 = vpop.f32.mrb[0].mxu0
    %v1315 = vpop.f32.mrb[0].mxu0
    %1316 = vdwg.mxu0
    %1317 = vmatprep.subr.bf16.mxu0 0
    %1318 = vmatpush1.bf16.msra.mxu0 %v775
    %1319 = vmatprep.subr.bf16.mxu0 0
    %1320 = vmatpush1.bf16.msra.mxu0 %v778
    %1321 = vmatprep.subr.bf16.mxu0 0
    %1322 = vmatpush1.bf16.msra.mxu0 %v781
    %1323 = vmatprep.subr.bf16.mxu0 0
    %1324 = vmatpush1.bf16.msra.mxu0 %v784
    %1325 = vmatprep.subr.bf16.mxu0 0
    %1326 = vmatpush1.bf16.msra.mxu0 %v787
    %1327 = vmatprep.subr.bf16.mxu0 0
    %1328 = vmatpush1.bf16.msra.mxu0 %v790
    %1329 = vmatprep.subr.bf16.mxu0 0
    %1330 = vmatpush1.bf16.msra.mxu0 %v793
    %1331 = vmatprep.subr.bf16.mxu0 0
    %1332 = vmatpush1.bf16.msra.mxu0 %v796
    %1333 = vmatprep.subr.bf16.mxu0 0
    %1334 = vmatpush1.bf16.msra.mxu0 0
    %1335 = vmatprep.subr.bf16.mxu0 0
    %1336 = vmatpush1.bf16.msra.mxu0 0
    %1337 = vmatprep.subr.bf16.mxu0 0
    %1338 = vmatpush1.bf16.msra.mxu0 0
    %1339 = vmatprep.subr.bf16.mxu0 0
    %1340 = vmatpush1.bf16.msra.mxu0 0
    %1341 = vmatprep.subr.bf16.mxu0 0
    %1342 = vmatpush1.bf16.msra.mxu0 0
    %1343 = vmatprep.subr.bf16.mxu0 0
    %1344 = vmatpush1.bf16.msra.mxu0 0
    %1345 = vmatprep.subr.bf16.mxu0 0
    %1346 = vmatpush1.bf16.msra.mxu0 0
    %1347 = vmatprep.subr.bf16.mxu0 0
    %1348 = vmatpush1.bf16.msra.mxu0 0
    %1349 = vmatprep.mubr.bf16.mxu0 0
    %1350 = vmatmul.mubr.bf16.gmra.mrb[0].mxu0 %v1274
    %v1351 = vpop.f32.mrb[0].mxu0
    %v1352 = vadd.f32 0.0, %v1351
    %v1353 = vpop.f32.mrb[0].mxu0
    %v1354 = vpop.f32.mrb[0].mxu0
    %v1355 = vpop.f32.mrb[0].mxu0
    %1356 = vdwg.mxu0
    %v1358 = vrot.slane %v1311, 5
    %v1359 = vrot.slane %v1311, 6
    %v1362 = vadd.f32 %v605, %v1358
    %v1363 = vadd.f32 %v609, %v1359
    %v1364 = vxor.u32 %v1362, 2147483648
    %v1365 = vxor.u32 %v1363, 2147483648
    %v1366 = vmul.f32 %v1364, 1.442695
    %v1367 = vpow.pop %v1366
    %v1368 = vmul.f32 %v1365, 1.442695
    %v1369 = vpow.pop %v1368
    %v1370 = vadd.f32 %v1367, 1.0
    %v1371 = vadd.f32 %v1369, 1.0
    %v1372 = vrcp.pop %v1370
    %v1373 = vmul.f32 1.0, %v1372
    %v1374 = vrcp.pop %v1371
    %v1375 = vmul.f32 1.0, %v1374
    %v1377 = vrot.slane %v1313, 5
    %v1378 = vrot.slane %v1313, 6
    %v1381 = vadd.f32 %v607, %v1377
    %v1382 = vadd.f32 %v611, %v1378
    %v1383 = vxor.u32 %v1381, 2147483648
    %v1384 = vxor.u32 %v1382, 2147483648
    %v1385 = vmul.f32 %v1383, 1.442695
    %v1386 = vpow.pop %v1385
    %v1387 = vmul.f32 %v1384, 1.442695
    %v1388 = vpow.pop %v1387
    %v1389 = vadd.f32 %v1386, 1.0
    %v1390 = vadd.f32 %v1388, 1.0
    %v1391 = vrcp.pop %v1389
    %v1392 = vmul.f32 1.0, %v1391
    %v1393 = vrcp.pop %v1390
    %v1394 = vmul.f32 1.0, %v1393
    %v1395 = vadd.f32 %v1352, %v691
    %v1397 = vrot.slane %v1395, 5
    %v1398 = vrot.slane %v1395, 6
    %v1401 = vmul.f32 %v1373, %v1397
    %v1402 = vmul.f32 %v1375, %v1398
    %v1403 = vadd.f32 %v648, %v1401
    %v1404 = vadd.f32 %v651, %v1402
    %v1405 = vtanh.pop %v1403
    %v1406 = vtanh.pop %v1404
    %v1407 = vsub.f32 1.0, %v1392
    %v1408 = vsub.f32 1.0, %v1394
    %v1409 = vmul.f32 %v1407, %v1405
    %v1410 = vmul.f32 %v1408, %v1406
    %v1413 = vrot.slane %v1263, 7
    %v1414 = vrot.slane %v1264, 7
    %v1417 = vmul.f32 %v1392, %v1413
    %v1418 = vmul.f32 %v1394, %v1414
    %v1419 = vadd.f32 %v1409, %v1417
    %v1420 = vadd.f32 %v1410, %v1418
    %v1421 = vpack.c.bf16 %v1419, %v1419
    %v1422 = vpack.c.bf16 %v1420, %v1420
    %v1425 = vunpack.c.l.b16 %v1421
    %v1426 = vunpack.c.l.b16 %v1422
    %v1427 = vrot.slane %v1425, 3
    %v1428 = vrot.slane %v1426, 2
    %v1429 = vsel %vm964, %v1428, %v1427
    %v1430 = vpack.c.b16 %v1429, %v1429
    %1432 = vmatprep.subr.bf16.mxu0 %v774
    %1433 = vmatpush1.bf16.msra.mxu0 %v773
    %1434 = vmatprep.subr.bf16.mxu0 %v777
    %1435 = vmatpush1.bf16.msra.mxu0 %v776
    %1436 = vmatprep.subr.bf16.mxu0 %v780
    %1437 = vmatpush1.bf16.msra.mxu0 %v779
    %1438 = vmatprep.subr.bf16.mxu0 %v783
    %1439 = vmatpush1.bf16.msra.mxu0 %v782
    %1440 = vmatprep.subr.bf16.mxu0 %v786
    %1441 = vmatpush1.bf16.msra.mxu0 %v785
    %1442 = vmatprep.subr.bf16.mxu0 %v789
    %1443 = vmatpush1.bf16.msra.mxu0 %v788
    %1444 = vmatprep.subr.bf16.mxu0 %v792
    %1445 = vmatpush1.bf16.msra.mxu0 %v791
    %1446 = vmatprep.subr.bf16.mxu0 %v795
    %1447 = vmatpush1.bf16.msra.mxu0 %v794
    %1448 = vmatprep.subr.bf16.mxu0 0
    %1449 = vmatpush1.bf16.msra.mxu0 0
    %1450 = vmatprep.subr.bf16.mxu0 0
    %1451 = vmatpush1.bf16.msra.mxu0 0
    %1452 = vmatprep.subr.bf16.mxu0 0
    %1453 = vmatpush1.bf16.msra.mxu0 0
    %1454 = vmatprep.subr.bf16.mxu0 0
    %1455 = vmatpush1.bf16.msra.mxu0 0
    %1456 = vmatprep.subr.bf16.mxu0 0
    %1457 = vmatpush1.bf16.msra.mxu0 0
    %1458 = vmatprep.subr.bf16.mxu0 0
    %1459 = vmatpush1.bf16.msra.mxu0 0
    %1460 = vmatprep.subr.bf16.mxu0 0
    %1461 = vmatpush1.bf16.msra.mxu0 0
    %1462 = vmatprep.subr.bf16.mxu0 0
    %1463 = vmatpush1.bf16.msra.mxu0 0
    %1464 = vmatprep.mubr.bf16.mxu0 0
    %1465 = vmatmul.mubr.bf16.gmra.mrb[0].mxu0 %v1430
    %v1466 = vpop.f32.mrb[0].mxu0
    %v1467 = vadd.f32 0.0, %v1466
    %v1468 = vpop.f32.mrb[0].mxu0
    %v1469 = vadd.f32 0.0, %v1468
    %v1470 = vpop.f32.mrb[0].mxu0
    %v1471 = vpop.f32.mrb[0].mxu0
    %1472 = vdwg.mxu0
    %1473 = vmatprep.subr.bf16.mxu0 0
    %1474 = vmatpush1.bf16.msra.mxu0 %v775
    %1475 = vmatprep.subr.bf16.mxu0 0
    %1476 = vmatpush1.bf16.msra.mxu0 %v778
    %1477 = vmatprep.subr.bf16.mxu0 0
    %1478 = vmatpush1.bf16.msra.mxu0 %v781
    %1479 = vmatprep.subr.bf16.mxu0 0
    %1480 = vmatpush1.bf16.msra.mxu0 %v784
    %1481 = vmatprep.subr.bf16.mxu0 0
    %1482 = vmatpush1.bf16.msra.mxu0 %v787
    %1483 = vmatprep.subr.bf16.mxu0 0
    %1484 = vmatpush1.bf16.msra.mxu0 %v790
    %1485 = vmatprep.subr.bf16.mxu0 0
    %1486 = vmatpush1.bf16.msra.mxu0 %v793
    %1487 = vmatprep.subr.bf16.mxu0 0
    %1488 = vmatpush1.bf16.msra.mxu0 %v796
    %1489 = vmatprep.subr.bf16.mxu0 0
    %1490 = vmatpush1.bf16.msra.mxu0 0
    %1491 = vmatprep.subr.bf16.mxu0 0
    %1492 = vmatpush1.bf16.msra.mxu0 0
    %1493 = vmatprep.subr.bf16.mxu0 0
    %1494 = vmatpush1.bf16.msra.mxu0 0
    %1495 = vmatprep.subr.bf16.mxu0 0
    %1496 = vmatpush1.bf16.msra.mxu0 0
    %1497 = vmatprep.subr.bf16.mxu0 0
    %1498 = vmatpush1.bf16.msra.mxu0 0
    %1499 = vmatprep.subr.bf16.mxu0 0
    %1500 = vmatpush1.bf16.msra.mxu0 0
    %1501 = vmatprep.subr.bf16.mxu0 0
    %1502 = vmatpush1.bf16.msra.mxu0 0
    %1503 = vmatprep.subr.bf16.mxu0 0
    %1504 = vmatpush1.bf16.msra.mxu0 0
    %1505 = vmatprep.mubr.bf16.mxu0 0
    %1506 = vmatmul.mubr.bf16.gmra.mrb[0].mxu0 %v1430
    %v1507 = vpop.f32.mrb[0].mxu0
    %v1508 = vadd.f32 0.0, %v1507
    %v1509 = vpop.f32.mrb[0].mxu0
    %v1510 = vpop.f32.mrb[0].mxu0
    %v1511 = vpop.f32.mrb[0].mxu0
    %1512 = vdwg.mxu0
    %v1514 = vrot.slane %v1467, 4
    %v1515 = vrot.slane %v1467, 5
    %v1518 = vadd.f32 %v605, %v1514
    %v1519 = vadd.f32 %v609, %v1515
    %v1520 = vxor.u32 %v1518, 2147483648
    %v1521 = vxor.u32 %v1519, 2147483648
    %v1522 = vmul.f32 %v1520, 1.442695
    %v1523 = vpow.pop %v1522
    %v1524 = vmul.f32 %v1521, 1.442695
    %v1525 = vpow.pop %v1524
    %v1526 = vadd.f32 %v1523, 1.0
    %v1527 = vadd.f32 %v1525, 1.0
    %v1528 = vrcp.pop %v1526
    %v1529 = vmul.f32 1.0, %v1528
    %v1530 = vrcp.pop %v1527
    %v1531 = vmul.f32 1.0, %v1530
    %v1533 = vrot.slane %v1469, 4
    %v1534 = vrot.slane %v1469, 5
    %v1537 = vadd.f32 %v607, %v1533
    %v1538 = vadd.f32 %v611, %v1534
    %v1539 = vxor.u32 %v1537, 2147483648
    %v1540 = vxor.u32 %v1538, 2147483648
    %v1541 = vmul.f32 %v1539, 1.442695
    %v1542 = vpow.pop %v1541
    %v1543 = vmul.f32 %v1540, 1.442695
    %v1544 = vpow.pop %v1543
    %v1545 = vadd.f32 %v1542, 1.0
    %v1546 = vadd.f32 %v1544, 1.0
    %v1547 = vrcp.pop %v1545
    %v1548 = vmul.f32 1.0, %v1547
    %v1549 = vrcp.pop %v1546
    %v1550 = vmul.f32 1.0, %v1549
    %v1551 = vadd.f32 %v1508, %v691
    %v1553 = vrot.slane %v1551, 4
    %v1554 = vrot.slane %v1551, 5
    %v1557 = vmul.f32 %v1529, %v1553
    %v1558 = vmul.f32 %v1531, %v1554
    %v1559 = vadd.f32 %v648, %v1557
    %v1560 = vadd.f32 %v651, %v1558
    %v1561 = vtanh.pop %v1559
    %v1562 = vtanh.pop %v1560
    %v1563 = vsub.f32 1.0, %v1548
    %v1564 = vsub.f32 1.0, %v1550
    %v1565 = vmul.f32 %v1563, %v1561
    %v1566 = vmul.f32 %v1564, %v1562
    %v1569 = vrot.slane %v1419, 7
    %v1570 = vrot.slane %v1420, 7
    %v1573 = vmul.f32 %v1548, %v1569
    %v1574 = vmul.f32 %v1550, %v1570
    %v1575 = vadd.f32 %v1565, %v1573
    %v1576 = vadd.f32 %v1566, %v1574
    %v1577 = vpack.c.bf16 %v1575, %v1575
    %v1578 = vpack.c.bf16 %v1576, %v1576
    %v1581 = vunpack.c.l.b16 %v1577
    %v1582 = vunpack.c.l.b16 %v1578
    %v1583 = vrot.slane %v1581, 4
    %v1584 = vrot.slane %v1582, 3
    %v1585 = vsel %vm964, %v1584, %v1583
    %v1586 = vpack.c.b16 %v1585, %v1585
    %1588 = vmatprep.subr.bf16.mxu0 %v774
    %1589 = vmatpush1.bf16.msra.mxu0 %v773
    %1590 = vmatprep.subr.bf16.mxu0 %v777
    %1591 = vmatpush1.bf16.msra.mxu0 %v776
    %1592 = vmatprep.subr.bf16.mxu0 %v780
    %1593 = vmatpush1.bf16.msra.mxu0 %v779
    %1594 = vmatprep.subr.bf16.mxu0 %v783
    %1595 = vmatpush1.bf16.msra.mxu0 %v782
    %1596 = vmatprep.subr.bf16.mxu0 %v786
    %1597 = vmatpush1.bf16.msra.mxu0 %v785
    %1598 = vmatprep.subr.bf16.mxu0 %v789
    %1599 = vmatpush1.bf16.msra.mxu0 %v788
    %1600 = vmatprep.subr.bf16.mxu0 %v792
    %1601 = vmatpush1.bf16.msra.mxu0 %v791
    %1602 = vmatprep.subr.bf16.mxu0 %v795
    %1603 = vmatpush1.bf16.msra.mxu0 %v794
    %1604 = vmatprep.subr.bf16.mxu0 0
    %1605 = vmatpush1.bf16.msra.mxu0 0
    %1606 = vmatprep.subr.bf16.mxu0 0
    %1607 = vmatpush1.bf16.msra.mxu0 0
    %1608 = vmatprep.subr.bf16.mxu0 0
    %1609 = vmatpush1.bf16.msra.mxu0 0
    %1610 = vmatprep.subr.bf16.mxu0 0
    %1611 = vmatpush1.bf16.msra.mxu0 0
    %1612 = vmatprep.subr.bf16.mxu0 0
    %1613 = vmatpush1.bf16.msra.mxu0 0
    %1614 = vmatprep.subr.bf16.mxu0 0
    %1615 = vmatpush1.bf16.msra.mxu0 0
    %1616 = vmatprep.subr.bf16.mxu0 0
    %1617 = vmatpush1.bf16.msra.mxu0 0
    %1618 = vmatprep.subr.bf16.mxu0 0
    %1619 = vmatpush1.bf16.msra.mxu0 0
    %1620 = vmatprep.mubr.bf16.mxu0 0
    %1621 = vmatmul.mubr.bf16.gmra.mrb[0].mxu0 %v1586
    %v1622 = vpop.f32.mrb[0].mxu0
    %v1623 = vadd.f32 0.0, %v1622
    %v1624 = vpop.f32.mrb[0].mxu0
    %v1625 = vadd.f32 0.0, %v1624
    %v1626 = vpop.f32.mrb[0].mxu0
    %v1627 = vpop.f32.mrb[0].mxu0
    %1628 = vdwg.mxu0
    %1629 = vmatprep.subr.bf16.mxu0 0
    %1630 = vmatpush1.bf16.msra.mxu0 %v775
    %1631 = vmatprep.subr.bf16.mxu0 0
    %1632 = vmatpush1.bf16.msra.mxu0 %v778
    %1633 = vmatprep.subr.bf16.mxu0 0
    %1634 = vmatpush1.bf16.msra.mxu0 %v781
    %1635 = vmatprep.subr.bf16.mxu0 0
    %1636 = vmatpush1.bf16.msra.mxu0 %v784
    %1637 = vmatprep.subr.bf16.mxu0 0
    %1638 = vmatpush1.bf16.msra.mxu0 %v787
    %1639 = vmatprep.subr.bf16.mxu0 0
    %1640 = vmatpush1.bf16.msra.mxu0 %v790
    %1641 = vmatprep.subr.bf16.mxu0 0
    %1642 = vmatpush1.bf16.msra.mxu0 %v793
    %1643 = vmatprep.subr.bf16.mxu0 0
    %1644 = vmatpush1.bf16.msra.mxu0 %v796
    %1645 = vmatprep.subr.bf16.mxu0 0
    %1646 = vmatpush1.bf16.msra.mxu0 0
    %1647 = vmatprep.subr.bf16.mxu0 0
    %1648 = vmatpush1.bf16.msra.mxu0 0
    %1649 = vmatprep.subr.bf16.mxu0 0
    %1650 = vmatpush1.bf16.msra.mxu0 0
    %1651 = vmatprep.subr.bf16.mxu0 0
    %1652 = vmatpush1.bf16.msra.mxu0 0
    %1653 = vmatprep.subr.bf16.mxu0 0
    %1654 = vmatpush1.bf16.msra.mxu0 0
    %1655 = vmatprep.subr.bf16.mxu0 0
    %1656 = vmatpush1.bf16.msra.mxu0 0
    %1657 = vmatprep.subr.bf16.mxu0 0
    %1658 = vmatpush1.bf16.msra.mxu0 0
    %1659 = vmatprep.subr.bf16.mxu0 0
    %1660 = vmatpush1.bf16.msra.mxu0 0
    %1661 = vmatprep.mubr.bf16.mxu0 0
    %1662 = vmatmul.mubr.bf16.gmra.mrb[0].mxu0 %v1586
    %v1663 = vpop.f32.mrb[0].mxu0
    %v1664 = vadd.f32 0.0, %v1663
    %v1665 = vpop.f32.mrb[0].mxu0
    %v1666 = vpop.f32.mrb[0].mxu0
    %v1667 = vpop.f32.mrb[0].mxu0
    %1668 = vdwg.mxu0
    %v1670 = vrot.slane %v1623, 3
    %v1671 = vrot.slane %v1623, 4
    %v1674 = vadd.f32 %v605, %v1670
    %v1675 = vadd.f32 %v609, %v1671
    %v1676 = vxor.u32 %v1674, 2147483648
    %v1677 = vxor.u32 %v1675, 2147483648
    %v1678 = vmul.f32 %v1676, 1.442695
    %v1679 = vpow.pop %v1678
    %v1680 = vmul.f32 %v1677, 1.442695
    %v1681 = vpow.pop %v1680
    %v1682 = vadd.f32 %v1679, 1.0
    %v1683 = vadd.f32 %v1681, 1.0
    %v1684 = vrcp.pop %v1682
    %v1685 = vmul.f32 1.0, %v1684
    %v1686 = vrcp.pop %v1683
    %v1687 = vmul.f32 1.0, %v1686
    %v1689 = vrot.slane %v1625, 3
    %v1690 = vrot.slane %v1625, 4
    %v1693 = vadd.f32 %v607, %v1689
    %v1694 = vadd.f32 %v611, %v1690
    %v1695 = vxor.u32 %v1693, 2147483648
    %v1696 = vxor.u32 %v1694, 2147483648
    %v1697 = vmul.f32 %v1695, 1.442695
    %v1698 = vpow.pop %v1697
    %v1699 = vmul.f32 %v1696, 1.442695
    %v1700 = vpow.pop %v1699
    %v1701 = vadd.f32 %v1698, 1.0
    %v1702 = vadd.f32 %v1700, 1.0
    %v1703 = vrcp.pop %v1701
    %v1704 = vmul.f32 1.0, %v1703
    %v1705 = vrcp.pop %v1702
    %v1706 = vmul.f32 1.0, %v1705
    %v1707 = vadd.f32 %v1664, %v691
    %v1709 = vrot.slane %v1707, 3
    %v1710 = vrot.slane %v1707, 4
    %v1713 = vmul.f32 %v1685, %v1709
    %v1714 = vmul.f32 %v1687, %v1710
    %v1715 = vadd.f32 %v648, %v1713
    %v1716 = vadd.f32 %v651, %v1714
    %v1717 = vtanh.pop %v1715
    %v1718 = vtanh.pop %v1716
    %v1719 = vsub.f32 1.0, %v1704
    %v1720 = vsub.f32 1.0, %v1706
    %v1721 = vmul.f32 %v1719, %v1717
    %v1722 = vmul.f32 %v1720, %v1718
    %v1725 = vrot.slane %v1575, 7
    %v1726 = vrot.slane %v1576, 7
    %v1729 = vmul.f32 %v1704, %v1725
    %v1730 = vmul.f32 %v1706, %v1726
    %v1731 = vadd.f32 %v1721, %v1729
    %v1732 = vadd.f32 %v1722, %v1730
    %v1733 = vpack.c.bf16 %v1731, %v1731
    %v1734 = vpack.c.bf16 %v1732, %v1732
    %v1737 = vunpack.c.l.b16 %v1733
    %v1738 = vunpack.c.l.b16 %v1734
    %v1739 = vrot.slane %v1737, 5
    %v1740 = vrot.slane %v1738, 4
    %v1741 = vsel %vm964, %v1740, %v1739
    %v1742 = vpack.c.b16 %v1741, %v1741
    %1744 = vmatprep.subr.bf16.mxu0 %v774
    %1745 = vmatpush1.bf16.msra.mxu0 %v773
    %1746 = vmatprep.subr.bf16.mxu0 %v777
    %1747 = vmatpush1.bf16.msra.mxu0 %v776
    %1748 = vmatprep.subr.bf16.mxu0 %v780
    %1749 = vmatpush1.bf16.msra.mxu0 %v779
    %1750 = vmatprep.subr.bf16.mxu0 %v783
    %1751 = vmatpush1.bf16.msra.mxu0 %v782
    %1752 = vmatprep.subr.bf16.mxu0 %v786
    %1753 = vmatpush1.bf16.msra.mxu0 %v785
    %1754 = vmatprep.subr.bf16.mxu0 %v789
    %1755 = vmatpush1.bf16.msra.mxu0 %v788
    %1756 = vmatprep.subr.bf16.mxu0 %v792
    %1757 = vmatpush1.bf16.msra.mxu0 %v791
    %1758 = vmatprep.subr.bf16.mxu0 %v795
    %1759 = vmatpush1.bf16.msra.mxu0 %v794
    %1760 = vmatprep.subr.bf16.mxu0 0
    %1761 = vmatpush1.bf16.msra.mxu0 0
    %1762 = vmatprep.subr.bf16.mxu0 0
    %1763 = vmatpush1.bf16.msra.mxu0 0
    %1764 = vmatprep.subr.bf16.mxu0 0
    %1765 = vmatpush1.bf16.msra.mxu0 0
    %1766 = vmatprep.subr.bf16.mxu0 0
    %1767 = vmatpush1.bf16.msra.mxu0 0
    %1768 = vmatprep.subr.bf16.mxu0 0
    %1769 = vmatpush1.bf16.msra.mxu0 0
    %1770 = vmatprep.subr.bf16.mxu0 0
    %1771 = vmatpush1.bf16.msra.mxu0 0
    %1772 = vmatprep.subr.bf16.mxu0 0
    %1773 = vmatpush1.bf16.msra.mxu0 0
    %1774 = vmatprep.subr.bf16.mxu0 0
    %1775 = vmatpush1.bf16.msra.mxu0 0
    %1776 = vmatprep.mubr.bf16.mxu0 0
    %1777 = vmatmul.mubr.bf16.gmra.mrb[0].mxu0 %v1742
    %v1778 = vpop.f32.mrb[0].mxu0
    %v1779 = vadd.f32 0.0, %v1778
    %v1780 = vpop.f32.mrb[0].mxu0
    %v1781 = vadd.f32 0.0, %v1780
    %v1782 = vpop.f32.mrb[0].mxu0
    %v1783 = vpop.f32.mrb[0].mxu0
    %1784 = vdwg.mxu0
    %1785 = vmatprep.subr.bf16.mxu0 0
    %1786 = vmatpush1.bf16.msra.mxu0 %v775
    %1787 = vmatprep.subr.bf16.mxu0 0
    %1788 = vmatpush1.bf16.msra.mxu0 %v778
    %1789 = vmatprep.subr.bf16.mxu0 0
    %1790 = vmatpush1.bf16.msra.mxu0 %v781
    %1791 = vmatprep.subr.bf16.mxu0 0
    %1792 = vmatpush1.bf16.msra.mxu0 %v784
    %1793 = vmatprep.subr.bf16.mxu0 0
    %1794 = vmatpush1.bf16.msra.mxu0 %v787
    %1795 = vmatprep.subr.bf16.mxu0 0
    %1796 = vmatpush1.bf16.msra.mxu0 %v790
    %1797 = vmatprep.subr.bf16.mxu0 0
    %1798 = vmatpush1.bf16.msra.mxu0 %v793
    %1799 = vmatprep.subr.bf16.mxu0 0
    %1800 = vmatpush1.bf16.msra.mxu0 %v796
    %1801 = vmatprep.subr.bf16.mxu0 0
    %1802 = vmatpush1.bf16.msra.mxu0 0
    %1803 = vmatprep.subr.bf16.mxu0 0
    %1804 = vmatpush1.bf16.msra.mxu0 0
    %1805 = vmatprep.subr.bf16.mxu0 0
    %1806 = vmatpush1.bf16.msra.mxu0 0
    %1807 = vmatprep.subr.bf16.mxu0 0
    %1808 = vmatpush1.bf16.msra.mxu0 0
    %1809 = vmatprep.subr.bf16.mxu0 0
    %1810 = vmatpush1.bf16.msra.mxu0 0
    %1811 = vmatprep.subr.bf16.mxu0 0
    %1812 = vmatpush1.bf16.msra.mxu0 0
    %1813 = vmatprep.subr.bf16.mxu0 0
    %1814 = vmatpush1.bf16.msra.mxu0 0
    %1815 = vmatprep.subr.bf16.mxu0 0
    %1816 = vmatpush1.bf16.msra.mxu0 0
    %1817 = vmatprep.mubr.bf16.mxu0 0
    %1818 = vmatmul.mubr.bf16.gmra.mrb[0].mxu0 %v1742
    %v1819 = vpop.f32.mrb[0].mxu0
    %v1820 = vadd.f32 0.0, %v1819
    %v1821 = vpop.f32.mrb[0].mxu0
    %v1822 = vpop.f32.mrb[0].mxu0
    %v1823 = vpop.f32.mrb[0].mxu0
    %1824 = vdwg.mxu0
    %v1826 = vrot.slane %v1779, 2
    %v1827 = vrot.slane %v1779, 3
    %v1830 = vadd.f32 %v605, %v1826
    %v1831 = vadd.f32 %v609, %v1827
    %v1832 = vxor.u32 %v1830, 2147483648
    %v1833 = vxor.u32 %v1831, 2147483648
    %v1834 = vmul.f32 %v1832, 1.442695
    %v1835 = vpow.pop %v1834
    %v1836 = vmul.f32 %v1833, 1.442695
    %v1837 = vpow.pop %v1836
    %v1838 = vadd.f32 %v1835, 1.0
    %v1839 = vadd.f32 %v1837, 1.0
    %v1840 = vrcp.pop %v1838
    %v1841 = vmul.f32 1.0, %v1840
    %v1842 = vrcp.pop %v1839
    %v1843 = vmul.f32 1.0, %v1842
    %v1845 = vrot.slane %v1781, 2
    %v1846 = vrot.slane %v1781, 3
    %v1849 = vadd.f32 %v607, %v1845
    %v1850 = vadd.f32 %v611, %v1846
    %v1851 = vxor.u32 %v1849, 2147483648
    %v1852 = vxor.u32 %v1850, 2147483648
    %v1853 = vmul.f32 %v1851, 1.442695
    %v1854 = vpow.pop %v1853
    %v1855 = vmul.f32 %v1852, 1.442695
    %v1856 = vpow.pop %v1855
    %v1857 = vadd.f32 %v1854, 1.0
    %v1858 = vadd.f32 %v1856, 1.0
    %v1859 = vrcp.pop %v1857
    %v1860 = vmul.f32 1.0, %v1859
    %v1861 = vrcp.pop %v1858
    %v1862 = vmul.f32 1.0, %v1861
    %v1863 = vadd.f32 %v1820, %v691
    %v1865 = vrot.slane %v1863, 2
    %v1866 = vrot.slane %v1863, 3
    %v1869 = vmul.f32 %v1841, %v1865
    %v1870 = vmul.f32 %v1843, %v1866
    %v1871 = vadd.f32 %v648, %v1869
    %v1872 = vadd.f32 %v651, %v1870
    %v1873 = vtanh.pop %v1871
    %v1874 = vtanh.pop %v1872
    %v1875 = vsub.f32 1.0, %v1860
    %v1876 = vsub.f32 1.0, %v1862
    %v1877 = vmul.f32 %v1875, %v1873
    %v1878 = vmul.f32 %v1876, %v1874
    %v1881 = vrot.slane %v1731, 7
    %v1882 = vrot.slane %v1732, 7
    %v1885 = vmul.f32 %v1860, %v1881
    %v1886 = vmul.f32 %v1862, %v1882
    %v1887 = vadd.f32 %v1877, %v1885
    %v1888 = vadd.f32 %v1878, %v1886
    %v1889 = vpack.c.bf16 %v1887, %v1887
    %v1890 = vpack.c.bf16 %v1888, %v1888
    %v1893 = vunpack.c.l.b16 %v1889
    %v1894 = vunpack.c.l.b16 %v1890
    %v1895 = vrot.slane %v1893, 6
    %v1896 = vrot.slane %v1894, 5
    %v1897 = vsel %vm964, %v1896, %v1895
    %v1898 = vpack.c.b16 %v1897, %v1897
    %1900 = vmatprep.subr.bf16.mxu0 %v774
    %1901 = vmatpush1.bf16.msra.mxu0 %v773
    %1902 = vmatprep.subr.bf16.mxu0 %v777
    %1903 = vmatpush1.bf16.msra.mxu0 %v776
    %1904 = vmatprep.subr.bf16.mxu0 %v780
    %1905 = vmatpush1.bf16.msra.mxu0 %v779
    %1906 = vmatprep.subr.bf16.mxu0 %v783
    %1907 = vmatpush1.bf16.msra.mxu0 %v782
    %1908 = vmatprep.subr.bf16.mxu0 %v786
    %1909 = vmatpush1.bf16.msra.mxu0 %v785
    %1910 = vmatprep.subr.bf16.mxu0 %v789
    %1911 = vmatpush1.bf16.msra.mxu0 %v788
    %1912 = vmatprep.subr.bf16.mxu0 %v792
    %1913 = vmatpush1.bf16.msra.mxu0 %v791
    %1914 = vmatprep.subr.bf16.mxu0 %v795
    %1915 = vmatpush1.bf16.msra.mxu0 %v794
    %1916 = vmatprep.subr.bf16.mxu0 0
    %1917 = vmatpush1.bf16.msra.mxu0 0
    %1918 = vmatprep.subr.bf16.mxu0 0
    %1919 = vmatpush1.bf16.msra.mxu0 0
    %1920 = vmatprep.subr.bf16.mxu0 0
    %1921 = vmatpush1.bf16.msra.mxu0 0
    %1922 = vmatprep.subr.bf16.mxu0 0
    %1923 = vmatpush1.bf16.msra.mxu0 0
    %1924 = vmatprep.subr.bf16.mxu0 0
    %1925 = vmatpush1.bf16.msra.mxu0 0
    %1926 = vmatprep.subr.bf16.mxu0 0
    %1927 = vmatpush1.bf16.msra.mxu0 0
    %1928 = vmatprep.subr.bf16.mxu0 0
    %1929 = vmatpush1.bf16.msra.mxu0 0
    %1930 = vmatprep.subr.bf16.mxu0 0
    %1931 = vmatpush1.bf16.msra.mxu0 0
    %1932 = vmatprep.mubr.bf16.mxu0 0
    %1933 = vmatmul.mubr.bf16.gmra.mrb[0].mxu0 %v1898
    %v1934 = vpop.f32.mrb[0].mxu0
    %v1935 = vadd.f32 0.0, %v1934
    %v1936 = vpop.f32.mrb[0].mxu0
    %v1937 = vadd.f32 0.0, %v1936
    %v1938 = vpop.f32.mrb[0].mxu0
    %v1939 = vpop.f32.mrb[0].mxu0
    %1940 = vdwg.mxu0
    %1941 = vmatprep.subr.bf16.mxu0 0
    %1942 = vmatpush1.bf16.msra.mxu0 %v775
    %1943 = vmatprep.subr.bf16.mxu0 0
    %1944 = vmatpush1.bf16.msra.mxu0 %v778
    %1945 = vmatprep.subr.bf16.mxu0 0
    %1946 = vmatpush1.bf16.msra.mxu0 %v781
    %1947 = vmatprep.subr.bf16.mxu0 0
    %1948 = vmatpush1.bf16.msra.mxu0 %v784
    %1949 = vmatprep.subr.bf16.mxu0 0
    %1950 = vmatpush1.bf16.msra.mxu0 %v787
    %1951 = vmatprep.subr.bf16.mxu0 0
    %1952 = vmatpush1.bf16.msra.mxu0 %v790
    %1953 = vmatprep.subr.bf16.mxu0 0
    %1954 = vmatpush1.bf16.msra.mxu0 %v793
    %1955 = vmatprep.subr.bf16.mxu0 0
    %1956 = vmatpush1.bf16.msra.mxu0 %v796
    %1957 = vmatprep.subr.bf16.mxu0 0
    %1958 = vmatpush1.bf16.msra.mxu0 0
    %1959 = vmatprep.subr.bf16.mxu0 0
    %1960 = vmatpush1.bf16.msra.mxu0 0
    %1961 = vmatprep.subr.bf16.mxu0 0
    %1962 = vmatpush1.bf16.msra.mxu0 0
    %1963 = vmatprep.subr.bf16.mxu0 0
    %1964 = vmatpush1.bf16.msra.mxu0 0
    %1965 = vmatprep.subr.bf16.mxu0 0
    %1966 = vmatpush1.bf16.msra.mxu0 0
    %1967 = vmatprep.subr.bf16.mxu0 0
    %1968 = vmatpush1.bf16.msra.mxu0 0
    %1969 = vmatprep.subr.bf16.mxu0 0
    %1970 = vmatpush1.bf16.msra.mxu0 0
    %1971 = vmatprep.subr.bf16.mxu0 0
    %1972 = vmatpush1.bf16.msra.mxu0 0
    %1973 = vmatprep.mubr.bf16.mxu0 0
    %1974 = vmatmul.mubr.bf16.gmra.mrb[0].mxu0 %v1898
    %v1975 = vpop.f32.mrb[0].mxu0
    %v1976 = vadd.f32 0.0, %v1975
    %v1977 = vpop.f32.mrb[0].mxu0
    %v1978 = vpop.f32.mrb[0].mxu0
    %v1979 = vpop.f32.mrb[0].mxu0
    %1980 = vdwg.mxu0
    %v1982 = vrot.slane %v1935, 1
    %v1983 = vrot.slane %v1935, 2
    %v1986 = vadd.f32 %v605, %v1982
    %v1987 = vadd.f32 %v609, %v1983
    %v1988 = vxor.u32 %v1986, 2147483648
    %v1989 = vxor.u32 %v1987, 2147483648
    %v1990 = vmul.f32 %v1988, 1.442695
    %v1991 = vpow.pop %v1990
    %v1992 = vmul.f32 %v1989, 1.442695
    %v1993 = vpow.pop %v1992
    %v1994 = vadd.f32 %v1991, 1.0
    %v1995 = vadd.f32 %v1993, 1.0
    %v1996 = vrcp.pop %v1994
    %v1997 = vmul.f32 1.0, %v1996
    %v1998 = vrcp.pop %v1995
    %v1999 = vmul.f32 1.0, %v1998
    %v2001 = vrot.slane %v1937, 1
    %v2002 = vrot.slane %v1937, 2
    %v2005 = vadd.f32 %v607, %v2001
    %v2006 = vadd.f32 %v611, %v2002
    %v2007 = vxor.u32 %v2005, 2147483648
    %v2008 = vxor.u32 %v2006, 2147483648
    %v2009 = vmul.f32 %v2007, 1.442695
    %v2010 = vpow.pop %v2009
    %v2011 = vmul.f32 %v2008, 1.442695
    %v2012 = vpow.pop %v2011
    %v2013 = vadd.f32 %v2010, 1.0
    %v2014 = vadd.f32 %v2012, 1.0
    %v2015 = vrcp.pop %v2013
    %v2016 = vmul.f32 1.0, %v2015
    %v2017 = vrcp.pop %v2014
    %v2018 = vmul.f32 1.0, %v2017
    %v2019 = vadd.f32 %v1976, %v691
    %v2021 = vrot.slane %v2019, 1
    %v2022 = vrot.slane %v2019, 2
    %v2025 = vmul.f32 %v1997, %v2021
    %v2026 = vmul.f32 %v1999, %v2022
    %v2027 = vadd.f32 %v648, %v2025
    %v2028 = vadd.f32 %v651, %v2026
    %v2029 = vtanh.pop %v2027
    %v2030 = vtanh.pop %v2028
    %v2031 = vsub.f32 1.0, %v2016
    %v2032 = vsub.f32 1.0, %v2018
    %v2033 = vmul.f32 %v2031, %v2029
    %v2034 = vmul.f32 %v2032, %v2030
    %v2037 = vrot.slane %v1887, 7
    %v2038 = vrot.slane %v1888, 7
    %v2041 = vmul.f32 %v2016, %v2037
    %v2042 = vmul.f32 %v2018, %v2038
    %v2043 = vadd.f32 %v2033, %v2041
    %v2044 = vadd.f32 %v2034, %v2042
    %v2045 = vsel %vm389, %v955, %v1108
    %v2046 = vsel %vm389, %v956, %v1109
    %vm2047 = vcmask 1041408
    %v2048 = vsel %vm2047, %v2045, %v1263
    %v2049 = vsel %vm2047, %v2046, %v1264
    %vm2050 = vcmask 1042432
    %v2051 = vsel %vm2050, %v2048, %v1419
    %v2052 = vsel %vm2050, %v2049, %v1420
    %vm2053 = vcmask 1043456
    %v2054 = vsel %vm2053, %v2051, %v1575
    %v2055 = vsel %vm2053, %v2052, %v1576
    %vm2056 = vcmask 1044480
    %v2057 = vsel %vm2056, %v2054, %v1731
    %v2058 = vsel %vm2056, %v2055, %v1732
    %vm2059 = vcmask 1045504
    %v2060 = vsel %vm2059, %v2057, %v1887
    %v2061 = vsel %vm2059, %v2058, %v1888
    %v2062 = vsel %vm312, %v2060, %v2043
    %v2063 = vsel %vm312, %v2061, %v2044
    %v2064 = vpack.c.bf16 %v2062, %v2062
    %v2065 = vpack.c.bf16 %v2063, %v2063
    %2066 = vst [vmem:[%s10] sm:$0xf] %v2064
    %2067 = vst [vmem:[%s10 + $0x4] sm:$0xf] %v2065
    // Predicated region
    $region70: #{video_text_forward.2} parent=1 // pred_check
      _
    $region71: #{video_text_forward.2} parent=1 // pred_check_branch
      %2069 = sbr.rel (0) target = $region73
    $region72: #{video_text_forward.2} parent=1 // pred_region
      _
    $region73: #{video_text_forward.2} parent=1 // pred_fallthru
      _
    // Predicated region
    $region74: #{video_text_forward.2} parent=1 // pred_check
      _
    $region75: #{video_text_forward.2} parent=1 // pred_check_branch
      %2071 = sbr.rel (0) target = $region77
    $region76: #{video_text_forward.2} parent=1 // pred_region
      _
    $region77: #{video_text_forward.2} parent=1 // pred_fallthru
      _
    %2072 = vsyncpa [#allocation3], 1
    %2073 = vsyncpa [#allocation5], 1
    %2074 = vsyncpa [#allocation8], 1
    %2075 = vsyncpa [#allocation11], 1

</llo_original>
